<compile_context>
chip_gen: v5e
topology: v5e:2x2
jax: 0.10.0
libtpu: 0.0.40
codegen_flags: <defaults>
</compile_context>

<pallas_src>
import jax
import jax.numpy as jnp
from jax.experimental import pallas as pl
from jax.experimental.pallas import tpu as pltpu

# ----------------------------- model dims (small) ---------------------------
V = 64          # vocab size
VP = 128        # lane-padded vocab width for logits
E = 32          # embedding dim
H = 32          # LSTM hidden dim (4*H = 128 -> lane-aligned gate vector)
G = 4 * H       # gate vector width
T = 8           # number of autoregressively generated tokens
N_PREFIX = 4    # header prefix length
NEG_INF = -1e30
HEADER = {'key': 'C Major', 'meter': '4/4',
          'unit note length': '1/8', 'rhythm': 'reel'}


def _header_prefix_tokens(header, vocab_size):
    """Deterministic header -> prefix token ids (stand-in for vocab lookup)."""
    toks = []
    for k in ('key', 'meter', 'unit note length', 'rhythm'):
        toks.append(sum(ord(c) for c in header[k]) % vocab_size)
    return jnp.asarray(toks, dtype=jnp.int32)


# ------------------------------- Pallas kernel ------------------------------
def lstm_infer_kernel(prefix_ref, seed_ref,    # SMEM int32: (N_PREFIX,), (1,)
                      table_ref,               # VMEM f32: (V, 4H)  emb@W_ih + b
                      w_cat_ref,               # VMEM f32: (H, 4H+VP) = [W_hh|W_out]
                      b_out_ref,               # VMEM f32: (1, VP)  pad lanes -inf
                      out_tok_ref):            # SMEM int32 out: (T,)
    hid = w_cat_ref.shape[0]
    g = 4 * hid
    vp = b_out_ref.shape[1]

    def cell(tok, gates_h, c):
        """One LSTM cell update given the precomputed h_{t-1} @ W_hh vector."""
        # fused embedding @ W_ih + b : single dynamic row fetch from VMEM
        gates = table_ref[pl.ds(tok, 1), :] + gates_h            # (1, 4H)
        i_g = jax.nn.sigmoid(gates[:, 0 * hid:1 * hid])
        f_g = jax.nn.sigmoid(gates[:, 1 * hid:2 * hid])
        g_g = jnp.tanh(gates[:, 2 * hid:3 * hid])
        o_g = jax.nn.sigmoid(gates[:, 3 * hid:4 * hid])
        c_new = f_g * c + i_g * g_g
        h_new = o_g * jnp.tanh(c_new)
        return h_new, c_new

    # register-resident recurrent state (no VMEM scratch on the recurrence)
    c = jnp.zeros((1, hid), jnp.float32)
    gates_h = jnp.zeros((1, g), jnp.float32)      # == h0 @ W_hh with h0 = 0

    # ---- phase 1: condition on the header prefix (statically unrolled,
    #               recurrent half of the fused projection only) ----
    for p in range(prefix_ref.shape[0]):
        h, c = cell(prefix_ref[p], gates_h, c)
        gates_h = jnp.dot(h, w_cat_ref[:, :g],
                          preferred_element_type=jnp.float32)    # (1, 4H)

    # ---- phase 2: greedy autoregressive generation (statically unrolled) ----
    iota_v = jax.lax.broadcasted_iota(jnp.int32, (1, vp), 1)
    tok = seed_ref[0]
    for t in range(out_tok_ref.shape[0]):
        h, c = cell(tok, gates_h, c)
        # single fused MXU push: [ h @ W_hh | h @ W_out ]
        fused = jnp.dot(h, w_cat_ref[...],
                        preferred_element_type=jnp.float32)      # (1, 4H+VP)
        gates_h = fused[:, :g]                                   # for step t+1
        logits = fused[:, g:] + b_out_ref[...]                   # (1, VP)
        m = jnp.max(logits, axis=-1, keepdims=True)
        # lowest-index tie-break (jnp.argmax semantics); padded lanes are -inf
        nxt = jnp.min(jnp.where(logits >= m, iota_v, vp),
                      axis=-1, keepdims=True)[0, 0]
        out_tok_ref[t] = nxt        # SMEM write, off the recurrence chain
        tok = nxt


# --------------------------------- wrapper ----------------------------------
def make_params(key):
    ks = jax.random.split(key, 6)
    scale = 0.3
    return {
        'w_emb': scale * jax.random.normal(ks[0], (V, E), jnp.float32),
        'w_ih':  scale * jax.random.normal(ks[1], (E, 4 * H), jnp.float32),
        'w_hh':  scale * jax.random.normal(ks[2], (H, 4 * H), jnp.float32),
        'b':     scale * jax.random.normal(ks[3], (1, 4 * H), jnp.float32),
        'w_out': scale * jax.random.normal(ks[4], (H, V), jnp.float32),
        'b_out': scale * jax.random.normal(ks[5], (1, V), jnp.float32),
    }


@jax.jit
def inference_wrapper_forward(seed, params, prefix_tokens):
    """Equivalent of InferenceWrapper.forward(seed): returns (T,) int32 tokens."""
    # offline fusion 1: table[v] = emb[v] @ W_ih + b  -> (V, 4H) = (64, 128)
    table = (params['w_emb'] @ params['w_ih'] + params['b']).astype(jnp.float32)
    # offline fusion 2: [W_hh | W_out_padded] -> (H, 4H + VP) = (32, 256)
    w_out_p = jnp.zeros((H, VP), jnp.float32).at[:, :V].set(params['w_out'])
    w_cat = jnp.concatenate([params['w_hh'].astype(jnp.float32), w_out_p],
                            axis=1)
    # padded logit lanes forced to -inf so argmax stays in-vocab
    b_out_p = jnp.full((1, VP), NEG_INF, jnp.float32).at[:, :V].set(params['b_out'])

    smem = pl.BlockSpec(memory_space=pltpu.MemorySpace.SMEM)
    vmem = pl.BlockSpec(memory_space=pltpu.MemorySpace.VMEM)
    return pl.pallas_call(
        lstm_infer_kernel,
        out_shape=jax.ShapeDtypeStruct((T,), jnp.int32),
        in_specs=[smem, smem, vmem, vmem, vmem],
        out_specs=smem,
    )(prefix_tokens, seed, table, w_cat, b_out_p)


if __name__ == "__main__":
    key = jax.random.PRNGKey(0)
    params = make_params(key)
    prefix_tokens = _header_prefix_tokens(HEADER, V)

    # `seed` mirrors the scalar tensor whose .item() the original module uses.
    seed = jnp.asarray([7], dtype=jnp.int32)

    tokens = inference_wrapper_forward(seed, params, prefix_tokens)
    tokens = jax.block_until_ready(tokens)

    assert tokens.shape == (T,) and tokens.dtype == jnp.int32
    assert bool(jnp.all((tokens >= 0) & (tokens < V)))
    print("KERNEL_OK")
</pallas_src>

<mosaic_0001>
module attributes {stable_mosaic.version = 11 : i64} {
  func.func @lstm_infer_kernel(%arg0: memref<4xi32, #tpu.memory_space<smem>>, %arg1: memref<1xi32, #tpu.memory_space<smem>>, %arg2: memref<64x128xf32, #tpu.memory_space<vmem>>, %arg3: memref<32x256xf32, #tpu.memory_space<vmem>>, %arg4: memref<1x128xf32, #tpu.memory_space<vmem>>, %arg5: memref<8xi32, #tpu.memory_space<smem>>) attributes {dimension_semantics = [], scalar_prefetch = 0 : i64, scratch_operands = 0 : i64, tpu.core_type = #tpu.core_type<tc>} {
    %cst = arith.constant 0.000000e+00 : f32
    %0 = vector.broadcast %cst : f32 to vector<1x32xf32>
    %cst_0 = arith.constant 0.000000e+00 : f32
    %1 = vector.broadcast %cst_0 : f32 to vector<1x128xf32>
    %c0 = arith.constant 0 : index
    %2 = memref.load %arg0[%c0] : memref<4xi32, #tpu.memory_space<smem>>
    %3 = arith.index_cast %2 : i32 to index
    %c0_1 = arith.constant 0 : index
    %4 = vector.load %arg2[%3, %c0_1] : memref<64x128xf32, #tpu.memory_space<vmem>>, vector<1x128xf32>
    %5 = arith.addf %4, %1 : vector<1x128xf32>
    %6 = vector.extract_strided_slice %5 {offsets = [0, 0], sizes = [1, 32], strides = [1, 1]} : vector<1x128xf32> to vector<1x32xf32>
    %7 = arith.negf %6 : vector<1x32xf32>
    %8 = math.exp %7 : vector<1x32xf32>
    %cst_2 = arith.constant 1.000000e+00 : f32
    %9 = vector.broadcast %cst_2 : f32 to vector<1x32xf32>
    %10 = arith.addf %9, %8 : vector<1x32xf32>
    %11 = arith.divf %9, %10 : vector<1x32xf32>
    %12 = vector.extract_strided_slice %5 {offsets = [0, 32], sizes = [1, 32], strides = [1, 1]} : vector<1x128xf32> to vector<1x32xf32>
    %13 = arith.negf %12 : vector<1x32xf32>
    %14 = math.exp %13 : vector<1x32xf32>
    %cst_3 = arith.constant 1.000000e+00 : f32
    %15 = vector.broadcast %cst_3 : f32 to vector<1x32xf32>
    %16 = arith.addf %15, %14 : vector<1x32xf32>
    %17 = arith.divf %15, %16 : vector<1x32xf32>
    %18 = vector.extract_strided_slice %5 {offsets = [0, 64], sizes = [1, 32], strides = [1, 1]} : vector<1x128xf32> to vector<1x32xf32>
    %19 = math.tanh %18 : vector<1x32xf32>
    %20 = vector.extract_strided_slice %5 {offsets = [0, 96], sizes = [1, 32], strides = [1, 1]} : vector<1x128xf32> to vector<1x32xf32>
    %21 = arith.negf %20 : vector<1x32xf32>
    %22 = math.exp %21 : vector<1x32xf32>
    %cst_4 = arith.constant 1.000000e+00 : f32
    %23 = vector.broadcast %cst_4 : f32 to vector<1x32xf32>
    %24 = arith.addf %23, %22 : vector<1x32xf32>
    %25 = arith.divf %23, %24 : vector<1x32xf32>
    %26 = arith.mulf %17, %0 : vector<1x32xf32>
    %27 = arith.mulf %11, %19 : vector<1x32xf32>
    %28 = arith.addf %26, %27 : vector<1x32xf32>
    %29 = math.tanh %28 : vector<1x32xf32>
    %30 = arith.mulf %25, %29 : vector<1x32xf32>
    %c0_5 = arith.constant 0 : index
    %c0_6 = arith.constant 0 : index
    %31 = vector.load %arg3[%c0_5, %c0_6] : memref<32x256xf32, #tpu.memory_space<vmem>>, vector<32x128xf32>
    %cst_7 = arith.constant dense<0.000000e+00> : vector<1x128xf32>
    %32 = tpu.matmul %30, %31, %cst_7 {dimension_numbers = #tpu.dot_dimension_numbers<[1], [0], [0], [1], [0, 0, 1, 1], [], []>} : vector<1x32xf32>, vector<32x128xf32>, vector<1x128xf32> -> vector<1x128xf32>
    %c1 = arith.constant 1 : index
    %33 = memref.load %arg0[%c1] : memref<4xi32, #tpu.memory_space<smem>>
    %34 = arith.index_cast %33 : i32 to index
    %c0_8 = arith.constant 0 : index
    %35 = vector.load %arg2[%34, %c0_8] : memref<64x128xf32, #tpu.memory_space<vmem>>, vector<1x128xf32>
    %36 = arith.addf %35, %32 : vector<1x128xf32>
    %37 = vector.extract_strided_slice %36 {offsets = [0, 0], sizes = [1, 32], strides = [1, 1]} : vector<1x128xf32> to vector<1x32xf32>
    %38 = arith.negf %37 : vector<1x32xf32>
    %39 = math.exp %38 : vector<1x32xf32>
    %cst_9 = arith.constant 1.000000e+00 : f32
    %40 = vector.broadcast %cst_9 : f32 to vector<1x32xf32>
    %41 = arith.addf %40, %39 : vector<1x32xf32>
    %42 = arith.divf %40, %41 : vector<1x32xf32>
    %43 = vector.extract_strided_slice %36 {offsets = [0, 32], sizes = [1, 32], strides = [1, 1]} : vector<1x128xf32> to vector<1x32xf32>
    %44 = arith.negf %43 : vector<1x32xf32>
    %45 = math.exp %44 : vector<1x32xf32>
    %cst_10 = arith.constant 1.000000e+00 : f32
    %46 = vector.broadcast %cst_10 : f32 to vector<1x32xf32>
    %47 = arith.addf %46, %45 : vector<1x32xf32>
    %48 = arith.divf %46, %47 : vector<1x32xf32>
    %49 = vector.extract_strided_slice %36 {offsets = [0, 64], sizes = [1, 32], strides = [1, 1]} : vector<1x128xf32> to vector<1x32xf32>
    %50 = math.tanh %49 : vector<1x32xf32>
    %51 = vector.extract_strided_slice %36 {offsets = [0, 96], sizes = [1, 32], strides = [1, 1]} : vector<1x128xf32> to vector<1x32xf32>
    %52 = arith.negf %51 : vector<1x32xf32>
    %53 = math.exp %52 : vector<1x32xf32>
    %cst_11 = arith.constant 1.000000e+00 : f32
    %54 = vector.broadcast %cst_11 : f32 to vector<1x32xf32>
    %55 = arith.addf %54, %53 : vector<1x32xf32>
    %56 = arith.divf %54, %55 : vector<1x32xf32>
    %57 = arith.mulf %48, %28 : vector<1x32xf32>
    %58 = arith.mulf %42, %50 : vector<1x32xf32>
    %59 = arith.addf %57, %58 : vector<1x32xf32>
    %60 = math.tanh %59 : vector<1x32xf32>
    %61 = arith.mulf %56, %60 : vector<1x32xf32>
    %c0_12 = arith.constant 0 : index
    %c0_13 = arith.constant 0 : index
    %62 = vector.load %arg3[%c0_12, %c0_13] : memref<32x256xf32, #tpu.memory_space<vmem>>, vector<32x128xf32>
    %cst_14 = arith.constant dense<0.000000e+00> : vector<1x128xf32>
    %63 = tpu.matmul %61, %62, %cst_14 {dimension_numbers = #tpu.dot_dimension_numbers<[1], [0], [0], [1], [0, 0, 1, 1], [], []>} : vector<1x32xf32>, vector<32x128xf32>, vector<1x128xf32> -> vector<1x128xf32>
    %c2 = arith.constant 2 : index
    %64 = memref.load %arg0[%c2] : memref<4xi32, #tpu.memory_space<smem>>
    %65 = arith.index_cast %64 : i32 to index
    %c0_15 = arith.constant 0 : index
    %66 = vector.load %arg2[%65, %c0_15] : memref<64x128xf32, #tpu.memory_space<vmem>>, vector<1x128xf32>
    %67 = arith.addf %66, %63 : vector<1x128xf32>
    %68 = vector.extract_strided_slice %67 {offsets = [0, 0], sizes = [1, 32], strides = [1, 1]} : vector<1x128xf32> to vector<1x32xf32>
    %69 = arith.negf %68 : vector<1x32xf32>
    %70 = math.exp %69 : vector<1x32xf32>
    %cst_16 = arith.constant 1.000000e+00 : f32
    %71 = vector.broadcast %cst_16 : f32 to vector<1x32xf32>
    %72 = arith.addf %71, %70 : vector<1x32xf32>
    %73 = arith.divf %71, %72 : vector<1x32xf32>
    %74 = vector.extract_strided_slice %67 {offsets = [0, 32], sizes = [1, 32], strides = [1, 1]} : vector<1x128xf32> to vector<1x32xf32>
    %75 = arith.negf %74 : vector<1x32xf32>
    %76 = math.exp %75 : vector<1x32xf32>
    %cst_17 = arith.constant 1.000000e+00 : f32
    %77 = vector.broadcast %cst_17 : f32 to vector<1x32xf32>
    %78 = arith.addf %77, %76 : vector<1x32xf32>
    %79 = arith.divf %77, %78 : vector<1x32xf32>
    %80 = vector.extract_strided_slice %67 {offsets = [0, 64], sizes = [1, 32], strides = [1, 1]} : vector<1x128xf32> to vector<1x32xf32>
    %81 = math.tanh %80 : vector<1x32xf32>
    %82 = vector.extract_strided_slice %67 {offsets = [0, 96], sizes = [1, 32], strides = [1, 1]} : vector<1x128xf32> to vector<1x32xf32>
    %83 = arith.negf %82 : vector<1x32xf32>
    %84 = math.exp %83 : vector<1x32xf32>
    %cst_18 = arith.constant 1.000000e+00 : f32
    %85 = vector.broadcast %cst_18 : f32 to vector<1x32xf32>
    %86 = arith.addf %85, %84 : vector<1x32xf32>
    %87 = arith.divf %85, %86 : vector<1x32xf32>
    %88 = arith.mulf %79, %59 : vector<1x32xf32>
    %89 = arith.mulf %73, %81 : vector<1x32xf32>
    %90 = arith.addf %88, %89 : vector<1x32xf32>
    %91 = math.tanh %90 : vector<1x32xf32>
    %92 = arith.mulf %87, %91 : vector<1x32xf32>
    %c0_19 = arith.constant 0 : index
    %c0_20 = arith.constant 0 : index
    %93 = vector.load %arg3[%c0_19, %c0_20] : memref<32x256xf32, #tpu.memory_space<vmem>>, vector<32x128xf32>
    %cst_21 = arith.constant dense<0.000000e+00> : vector<1x128xf32>
    %94 = tpu.matmul %92, %93, %cst_21 {dimension_numbers = #tpu.dot_dimension_numbers<[1], [0], [0], [1], [0, 0, 1, 1], [], []>} : vector<1x32xf32>, vector<32x128xf32>, vector<1x128xf32> -> vector<1x128xf32>
    %c3 = arith.constant 3 : index
    %95 = memref.load %arg0[%c3] : memref<4xi32, #tpu.memory_space<smem>>
    %96 = arith.index_cast %95 : i32 to index
    %c0_22 = arith.constant 0 : index
    %97 = vector.load %arg2[%96, %c0_22] : memref<64x128xf32, #tpu.memory_space<vmem>>, vector<1x128xf32>
    %98 = arith.addf %97, %94 : vector<1x128xf32>
    %99 = vector.extract_strided_slice %98 {offsets = [0, 0], sizes = [1, 32], strides = [1, 1]} : vector<1x128xf32> to vector<1x32xf32>
    %100 = arith.negf %99 : vector<1x32xf32>
    %101 = math.exp %100 : vector<1x32xf32>
    %cst_23 = arith.constant 1.000000e+00 : f32
    %102 = vector.broadcast %cst_23 : f32 to vector<1x32xf32>
    %103 = arith.addf %102, %101 : vector<1x32xf32>
    %104 = arith.divf %102, %103 : vector<1x32xf32>
    %105 = vector.extract_strided_slice %98 {offsets = [0, 32], sizes = [1, 32], strides = [1, 1]} : vector<1x128xf32> to vector<1x32xf32>
    %106 = arith.negf %105 : vector<1x32xf32>
    %107 = math.exp %106 : vector<1x32xf32>
    %cst_24 = arith.constant 1.000000e+00 : f32
    %108 = vector.broadcast %cst_24 : f32 to vector<1x32xf32>
    %109 = arith.addf %108, %107 : vector<1x32xf32>
    %110 = arith.divf %108, %109 : vector<1x32xf32>
    %111 = vector.extract_strided_slice %98 {offsets = [0, 64], sizes = [1, 32], strides = [1, 1]} : vector<1x128xf32> to vector<1x32xf32>
    %112 = math.tanh %111 : vector<1x32xf32>
    %113 = vector.extract_strided_slice %98 {offsets = [0, 96], sizes = [1, 32], strides = [1, 1]} : vector<1x128xf32> to vector<1x32xf32>
    %114 = arith.negf %113 : vector<1x32xf32>
    %115 = math.exp %114 : vector<1x32xf32>
    %cst_25 = arith.constant 1.000000e+00 : f32
    %116 = vector.broadcast %cst_25 : f32 to vector<1x32xf32>
    %117 = arith.addf %116, %115 : vector<1x32xf32>
    %118 = arith.divf %116, %117 : vector<1x32xf32>
    %119 = arith.mulf %110, %90 : vector<1x32xf32>
    %120 = arith.mulf %104, %112 : vector<1x32xf32>
    %121 = arith.addf %119, %120 : vector<1x32xf32>
    %122 = math.tanh %121 : vector<1x32xf32>
    %123 = arith.mulf %118, %122 : vector<1x32xf32>
    %c0_26 = arith.constant 0 : index
    %c0_27 = arith.constant 0 : index
    %124 = vector.load %arg3[%c0_26, %c0_27] : memref<32x256xf32, #tpu.memory_space<vmem>>, vector<32x128xf32>
    %cst_28 = arith.constant dense<0.000000e+00> : vector<1x128xf32>
    %125 = tpu.matmul %123, %124, %cst_28 {dimension_numbers = #tpu.dot_dimension_numbers<[1], [0], [0], [1], [0, 0, 1, 1], [], []>} : vector<1x32xf32>, vector<32x128xf32>, vector<1x128xf32> -> vector<1x128xf32>
    %126 = tpu.iota {dimensions = array<i32: 1>} : vector<1x128xi32>
    %c0_29 = arith.constant 0 : index
    %127 = memref.load %arg1[%c0_29] : memref<1xi32, #tpu.memory_space<smem>>
    %128 = arith.index_cast %127 : i32 to index
    %c0_30 = arith.constant 0 : index
    %129 = vector.load %arg2[%128, %c0_30] : memref<64x128xf32, #tpu.memory_space<vmem>>, vector<1x128xf32>
    %130 = arith.addf %129, %125 : vector<1x128xf32>
    %131 = vector.extract_strided_slice %130 {offsets = [0, 0], sizes = [1, 32], strides = [1, 1]} : vector<1x128xf32> to vector<1x32xf32>
    %132 = arith.negf %131 : vector<1x32xf32>
    %133 = math.exp %132 : vector<1x32xf32>
    %cst_31 = arith.constant 1.000000e+00 : f32
    %134 = vector.broadcast %cst_31 : f32 to vector<1x32xf32>
    %135 = arith.addf %134, %133 : vector<1x32xf32>
    %136 = arith.divf %134, %135 : vector<1x32xf32>
    %137 = vector.extract_strided_slice %130 {offsets = [0, 32], sizes = [1, 32], strides = [1, 1]} : vector<1x128xf32> to vector<1x32xf32>
    %138 = arith.negf %137 : vector<1x32xf32>
    %139 = math.exp %138 : vector<1x32xf32>
    %cst_32 = arith.constant 1.000000e+00 : f32
    %140 = vector.broadcast %cst_32 : f32 to vector<1x32xf32>
    %141 = arith.addf %140, %139 : vector<1x32xf32>
    %142 = arith.divf %140, %141 : vector<1x32xf32>
    %143 = vector.extract_strided_slice %130 {offsets = [0, 64], sizes = [1, 32], strides = [1, 1]} : vector<1x128xf32> to vector<1x32xf32>
    %144 = math.tanh %143 : vector<1x32xf32>
    %145 = vector.extract_strided_slice %130 {offsets = [0, 96], sizes = [1, 32], strides = [1, 1]} : vector<1x128xf32> to vector<1x32xf32>
    %146 = arith.negf %145 : vector<1x32xf32>
    %147 = math.exp %146 : vector<1x32xf32>
    %cst_33 = arith.constant 1.000000e+00 : f32
    %148 = vector.broadcast %cst_33 : f32 to vector<1x32xf32>
    %149 = arith.addf %148, %147 : vector<1x32xf32>
    %150 = arith.divf %148, %149 : vector<1x32xf32>
    %151 = arith.mulf %142, %121 : vector<1x32xf32>
    %152 = arith.mulf %136, %144 : vector<1x32xf32>
    %153 = arith.addf %151, %152 : vector<1x32xf32>
    %154 = math.tanh %153 : vector<1x32xf32>
    %155 = arith.mulf %150, %154 : vector<1x32xf32>
    %c0_34 = arith.constant 0 : index
    %c0_35 = arith.constant 0 : index
    %156 = vector.load %arg3[%c0_34, %c0_35] : memref<32x256xf32, #tpu.memory_space<vmem>>, vector<32x256xf32>
    %cst_36 = arith.constant dense<0.000000e+00> : vector<1x256xf32>
    %157 = tpu.matmul %155, %156, %cst_36 {dimension_numbers = #tpu.dot_dimension_numbers<[1], [0], [0], [1], [0, 0, 1, 1], [], []>} : vector<1x32xf32>, vector<32x256xf32>, vector<1x256xf32> -> vector<1x256xf32>
    %158 = vector.extract_strided_slice %157 {offsets = [0, 0], sizes = [1, 128], strides = [1, 1]} : vector<1x256xf32> to vector<1x128xf32>
    %159 = vector.extract_strided_slice %157 {offsets = [0, 128], sizes = [1, 128], strides = [1, 1]} : vector<1x256xf32> to vector<1x128xf32>
    %c0_37 = arith.constant 0 : index
    %c0_38 = arith.constant 0 : index
    %160 = vector.load %arg4[%c0_37, %c0_38] : memref<1x128xf32, #tpu.memory_space<vmem>>, vector<1x128xf32>
    %161 = arith.addf %159, %160 : vector<1x128xf32>
    %cst_39 = arith.constant dense<0xFF800000> : vector<1xf32>
    %162 = vector.multi_reduction <maximumf>, %161, %cst_39 [1] : vector<1x128xf32> to vector<1xf32>
    %163 = vector.shape_cast %162 : vector<1xf32> to vector<1x1xf32>
    %164 = vector.broadcast %163 : vector<1x1xf32> to vector<1x128xf32>
    %165 = arith.cmpf oge, %161, %164 : vector<1x128xf32>
    %c128_i32 = arith.constant 128 : i32
    %166 = vector.broadcast %c128_i32 : i32 to vector<1x128xi32>
    %167 = arith.select %165, %126, %166 : vector<1x128xi1>, vector<1x128xi32>
    %cst_40 = arith.constant dense<2147483647> : vector<1xi32>
    %168 = vector.multi_reduction <minsi>, %167, %cst_40 [1] : vector<1x128xi32> to vector<1xi32>
    %169 = vector.shape_cast %168 : vector<1xi32> to vector<1x1xi32>
    %170 = vector.extract %169[0, 0] : i32 from vector<1x1xi32>
    %c0_41 = arith.constant 0 : index
    %171 = memref.load %arg5[%c0_41] : memref<8xi32, #tpu.memory_space<smem>>
    memref.store %170, %arg5[%c0_41] : memref<8xi32, #tpu.memory_space<smem>>
    %172 = arith.index_cast %170 : i32 to index
    %c0_42 = arith.constant 0 : index
    %173 = vector.load %arg2[%172, %c0_42] : memref<64x128xf32, #tpu.memory_space<vmem>>, vector<1x128xf32>
    %174 = arith.addf %173, %158 : vector<1x128xf32>
    %175 = vector.extract_strided_slice %174 {offsets = [0, 0], sizes = [1, 32], strides = [1, 1]} : vector<1x128xf32> to vector<1x32xf32>
    %176 = arith.negf %175 : vector<1x32xf32>
    %177 = math.exp %176 : vector<1x32xf32>
    %cst_43 = arith.constant 1.000000e+00 : f32
    %178 = vector.broadcast %cst_43 : f32 to vector<1x32xf32>
    %179 = arith.addf %178, %177 : vector<1x32xf32>
    %180 = arith.divf %178, %179 : vector<1x32xf32>
    %181 = vector.extract_strided_slice %174 {offsets = [0, 32], sizes = [1, 32], strides = [1, 1]} : vector<1x128xf32> to vector<1x32xf32>
    %182 = arith.negf %181 : vector<1x32xf32>
    %183 = math.exp %182 : vector<1x32xf32>
    %cst_44 = arith.constant 1.000000e+00 : f32
    %184 = vector.broadcast %cst_44 : f32 to vector<1x32xf32>
    %185 = arith.addf %184, %183 : vector<1x32xf32>
    %186 = arith.divf %184, %185 : vector<1x32xf32>
    %187 = vector.extract_strided_slice %174 {offsets = [0, 64], sizes = [1, 32], strides = [1, 1]} : vector<1x128xf32> to vector<1x32xf32>
    %188 = math.tanh %187 : vector<1x32xf32>
    %189 = vector.extract_strided_slice %174 {offsets = [0, 96], sizes = [1, 32], strides = [1, 1]} : vector<1x128xf32> to vector<1x32xf32>
    %190 = arith.negf %189 : vector<1x32xf32>
    %191 = math.exp %190 : vector<1x32xf32>
    %cst_45 = arith.constant 1.000000e+00 : f32
    %192 = vector.broadcast %cst_45 : f32 to vector<1x32xf32>
    %193 = arith.addf %192, %191 : vector<1x32xf32>
    %194 = arith.divf %192, %193 : vector<1x32xf32>
    %195 = arith.mulf %186, %153 : vector<1x32xf32>
    %196 = arith.mulf %180, %188 : vector<1x32xf32>
    %197 = arith.addf %195, %196 : vector<1x32xf32>
    %198 = math.tanh %197 : vector<1x32xf32>
    %199 = arith.mulf %194, %198 : vector<1x32xf32>
    %c0_46 = arith.constant 0 : index
    %c0_47 = arith.constant 0 : index
    %200 = vector.load %arg3[%c0_46, %c0_47] : memref<32x256xf32, #tpu.memory_space<vmem>>, vector<32x256xf32>
    %cst_48 = arith.constant dense<0.000000e+00> : vector<1x256xf32>
    %201 = tpu.matmul %199, %200, %cst_48 {dimension_numbers = #tpu.dot_dimension_numbers<[1], [0], [0], [1], [0, 0, 1, 1], [], []>} : vector<1x32xf32>, vector<32x256xf32>, vector<1x256xf32> -> vector<1x256xf32>
    %202 = vector.extract_strided_slice %201 {offsets = [0, 0], sizes = [1, 128], strides = [1, 1]} : vector<1x256xf32> to vector<1x128xf32>
    %203 = vector.extract_strided_slice %201 {offsets = [0, 128], sizes = [1, 128], strides = [1, 1]} : vector<1x256xf32> to vector<1x128xf32>
    %c0_49 = arith.constant 0 : index
    %c0_50 = arith.constant 0 : index
    %204 = vector.load %arg4[%c0_49, %c0_50] : memref<1x128xf32, #tpu.memory_space<vmem>>, vector<1x128xf32>
    %205 = arith.addf %203, %204 : vector<1x128xf32>
    %cst_51 = arith.constant dense<0xFF800000> : vector<1xf32>
    %206 = vector.multi_reduction <maximumf>, %205, %cst_51 [1] : vector<1x128xf32> to vector<1xf32>
    %207 = vector.shape_cast %206 : vector<1xf32> to vector<1x1xf32>
    %208 = vector.broadcast %207 : vector<1x1xf32> to vector<1x128xf32>
    %209 = arith.cmpf oge, %205, %208 : vector<1x128xf32>
    %c128_i32_52 = arith.constant 128 : i32
    %210 = vector.broadcast %c128_i32_52 : i32 to vector<1x128xi32>
    %211 = arith.select %209, %126, %210 : vector<1x128xi1>, vector<1x128xi32>
    %cst_53 = arith.constant dense<2147483647> : vector<1xi32>
    %212 = vector.multi_reduction <minsi>, %211, %cst_53 [1] : vector<1x128xi32> to vector<1xi32>
    %213 = vector.shape_cast %212 : vector<1xi32> to vector<1x1xi32>
    %214 = vector.extract %213[0, 0] : i32 from vector<1x1xi32>
    %c1_54 = arith.constant 1 : index
    %215 = memref.load %arg5[%c1_54] : memref<8xi32, #tpu.memory_space<smem>>
    memref.store %214, %arg5[%c1_54] : memref<8xi32, #tpu.memory_space<smem>>
    %216 = arith.index_cast %214 : i32 to index
    %c0_55 = arith.constant 0 : index
    %217 = vector.load %arg2[%216, %c0_55] : memref<64x128xf32, #tpu.memory_space<vmem>>, vector<1x128xf32>
    %218 = arith.addf %217, %202 : vector<1x128xf32>
    %219 = vector.extract_strided_slice %218 {offsets = [0, 0], sizes = [1, 32], strides = [1, 1]} : vector<1x128xf32> to vector<1x32xf32>
    %220 = arith.negf %219 : vector<1x32xf32>
    %221 = math.exp %220 : vector<1x32xf32>
    %cst_56 = arith.constant 1.000000e+00 : f32
    %222 = vector.broadcast %cst_56 : f32 to vector<1x32xf32>
    %223 = arith.addf %222, %221 : vector<1x32xf32>
    %224 = arith.divf %222, %223 : vector<1x32xf32>
    %225 = vector.extract_strided_slice %218 {offsets = [0, 32], sizes = [1, 32], strides = [1, 1]} : vector<1x128xf32> to vector<1x32xf32>
    %226 = arith.negf %225 : vector<1x32xf32>
    %227 = math.exp %226 : vector<1x32xf32>
    %cst_57 = arith.constant 1.000000e+00 : f32
    %228 = vector.broadcast %cst_57 : f32 to vector<1x32xf32>
    %229 = arith.addf %228, %227 : vector<1x32xf32>
    %230 = arith.divf %228, %229 : vector<1x32xf32>
    %231 = vector.extract_strided_slice %218 {offsets = [0, 64], sizes = [1, 32], strides = [1, 1]} : vector<1x128xf32> to vector<1x32xf32>
    %232 = math.tanh %231 : vector<1x32xf32>
    %233 = vector.extract_strided_slice %218 {offsets = [0, 96], sizes = [1, 32], strides = [1, 1]} : vector<1x128xf32> to vector<1x32xf32>
    %234 = arith.negf %233 : vector<1x32xf32>
    %235 = math.exp %234 : vector<1x32xf32>
    %cst_58 = arith.constant 1.000000e+00 : f32
    %236 = vector.broadcast %cst_58 : f32 to vector<1x32xf32>
    %237 = arith.addf %236, %235 : vector<1x32xf32>
    %238 = arith.divf %236, %237 : vector<1x32xf32>
    %239 = arith.mulf %230, %197 : vector<1x32xf32>
    %240 = arith.mulf %224, %232 : vector<1x32xf32>
    %241 = arith.addf %239, %240 : vector<1x32xf32>
    %242 = math.tanh %241 : vector<1x32xf32>
    %243 = arith.mulf %238, %242 : vector<1x32xf32>
    %c0_59 = arith.constant 0 : index
    %c0_60 = arith.constant 0 : index
    %244 = vector.load %arg3[%c0_59, %c0_60] : memref<32x256xf32, #tpu.memory_space<vmem>>, vector<32x256xf32>
    %cst_61 = arith.constant dense<0.000000e+00> : vector<1x256xf32>
    %245 = tpu.matmul %243, %244, %cst_61 {dimension_numbers = #tpu.dot_dimension_numbers<[1], [0], [0], [1], [0, 0, 1, 1], [], []>} : vector<1x32xf32>, vector<32x256xf32>, vector<1x256xf32> -> vector<1x256xf32>
    %246 = vector.extract_strided_slice %245 {offsets = [0, 0], sizes = [1, 128], strides = [1, 1]} : vector<1x256xf32> to vector<1x128xf32>
    %247 = vector.extract_strided_slice %245 {offsets = [0, 128], sizes = [1, 128], strides = [1, 1]} : vector<1x256xf32> to vector<1x128xf32>
    %c0_62 = arith.constant 0 : index
    %c0_63 = arith.constant 0 : index
    %248 = vector.load %arg4[%c0_62, %c0_63] : memref<1x128xf32, #tpu.memory_space<vmem>>, vector<1x128xf32>
    %249 = arith.addf %247, %248 : vector<1x128xf32>
    %cst_64 = arith.constant dense<0xFF800000> : vector<1xf32>
    %250 = vector.multi_reduction <maximumf>, %249, %cst_64 [1] : vector<1x128xf32> to vector<1xf32>
    %251 = vector.shape_cast %250 : vector<1xf32> to vector<1x1xf32>
    %252 = vector.broadcast %251 : vector<1x1xf32> to vector<1x128xf32>
    %253 = arith.cmpf oge, %249, %252 : vector<1x128xf32>
    %c128_i32_65 = arith.constant 128 : i32
    %254 = vector.broadcast %c128_i32_65 : i32 to vector<1x128xi32>
    %255 = arith.select %253, %126, %254 : vector<1x128xi1>, vector<1x128xi32>
    %cst_66 = arith.constant dense<2147483647> : vector<1xi32>
    %256 = vector.multi_reduction <minsi>, %255, %cst_66 [1] : vector<1x128xi32> to vector<1xi32>
    %257 = vector.shape_cast %256 : vector<1xi32> to vector<1x1xi32>
    %258 = vector.extract %257[0, 0] : i32 from vector<1x1xi32>
    %c2_67 = arith.constant 2 : index
    %259 = memref.load %arg5[%c2_67] : memref<8xi32, #tpu.memory_space<smem>>
    memref.store %258, %arg5[%c2_67] : memref<8xi32, #tpu.memory_space<smem>>
    %260 = arith.index_cast %258 : i32 to index
    %c0_68 = arith.constant 0 : index
    %261 = vector.load %arg2[%260, %c0_68] : memref<64x128xf32, #tpu.memory_space<vmem>>, vector<1x128xf32>
    %262 = arith.addf %261, %246 : vector<1x128xf32>
    %263 = vector.extract_strided_slice %262 {offsets = [0, 0], sizes = [1, 32], strides = [1, 1]} : vector<1x128xf32> to vector<1x32xf32>
    %264 = arith.negf %263 : vector<1x32xf32>
    %265 = math.exp %264 : vector<1x32xf32>
    %cst_69 = arith.constant 1.000000e+00 : f32
    %266 = vector.broadcast %cst_69 : f32 to vector<1x32xf32>
    %267 = arith.addf %266, %265 : vector<1x32xf32>
    %268 = arith.divf %266, %267 : vector<1x32xf32>
    %269 = vector.extract_strided_slice %262 {offsets = [0, 32], sizes = [1, 32], strides = [1, 1]} : vector<1x128xf32> to vector<1x32xf32>
    %270 = arith.negf %269 : vector<1x32xf32>
    %271 = math.exp %270 : vector<1x32xf32>
    %cst_70 = arith.constant 1.000000e+00 : f32
    %272 = vector.broadcast %cst_70 : f32 to vector<1x32xf32>
    %273 = arith.addf %272, %271 : vector<1x32xf32>
    %274 = arith.divf %272, %273 : vector<1x32xf32>
    %275 = vector.extract_strided_slice %262 {offsets = [0, 64], sizes = [1, 32], strides = [1, 1]} : vector<1x128xf32> to vector<1x32xf32>
    %276 = math.tanh %275 : vector<1x32xf32>
    %277 = vector.extract_strided_slice %262 {offsets = [0, 96], sizes = [1, 32], strides = [1, 1]} : vector<1x128xf32> to vector<1x32xf32>
    %278 = arith.negf %277 : vector<1x32xf32>
    %279 = math.exp %278 : vector<1x32xf32>
    %cst_71 = arith.constant 1.000000e+00 : f32
    %280 = vector.broadcast %cst_71 : f32 to vector<1x32xf32>
    %281 = arith.addf %280, %279 : vector<1x32xf32>
    %282 = arith.divf %280, %281 : vector<1x32xf32>
    %283 = arith.mulf %274, %241 : vector<1x32xf32>
    %284 = arith.mulf %268, %276 : vector<1x32xf32>
    %285 = arith.addf %283, %284 : vector<1x32xf32>
    %286 = math.tanh %285 : vector<1x32xf32>
    %287 = arith.mulf %282, %286 : vector<1x32xf32>
    %c0_72 = arith.constant 0 : index
    %c0_73 = arith.constant 0 : index
    %288 = vector.load %arg3[%c0_72, %c0_73] : memref<32x256xf32, #tpu.memory_space<vmem>>, vector<32x256xf32>
    %cst_74 = arith.constant dense<0.000000e+00> : vector<1x256xf32>
    %289 = tpu.matmul %287, %288, %cst_74 {dimension_numbers = #tpu.dot_dimension_numbers<[1], [0], [0], [1], [0, 0, 1, 1], [], []>} : vector<1x32xf32>, vector<32x256xf32>, vector<1x256xf32> -> vector<1x256xf32>
    %290 = vector.extract_strided_slice %289 {offsets = [0, 0], sizes = [1, 128], strides = [1, 1]} : vector<1x256xf32> to vector<1x128xf32>
    %291 = vector.extract_strided_slice %289 {offsets = [0, 128], sizes = [1, 128], strides = [1, 1]} : vector<1x256xf32> to vector<1x128xf32>
    %c0_75 = arith.constant 0 : index
    %c0_76 = arith.constant 0 : index
    %292 = vector.load %arg4[%c0_75, %c0_76] : memref<1x128xf32, #tpu.memory_space<vmem>>, vector<1x128xf32>
    %293 = arith.addf %291, %292 : vector<1x128xf32>
    %cst_77 = arith.constant dense<0xFF800000> : vector<1xf32>
    %294 = vector.multi_reduction <maximumf>, %293, %cst_77 [1] : vector<1x128xf32> to vector<1xf32>
    %295 = vector.shape_cast %294 : vector<1xf32> to vector<1x1xf32>
    %296 = vector.broadcast %295 : vector<1x1xf32> to vector<1x128xf32>
    %297 = arith.cmpf oge, %293, %296 : vector<1x128xf32>
    %c128_i32_78 = arith.constant 128 : i32
    %298 = vector.broadcast %c128_i32_78 : i32 to vector<1x128xi32>
    %299 = arith.select %297, %126, %298 : vector<1x128xi1>, vector<1x128xi32>
    %cst_79 = arith.constant dense<2147483647> : vector<1xi32>
    %300 = vector.multi_reduction <minsi>, %299, %cst_79 [1] : vector<1x128xi32> to vector<1xi32>
    %301 = vector.shape_cast %300 : vector<1xi32> to vector<1x1xi32>
    %302 = vector.extract %301[0, 0] : i32 from vector<1x1xi32>
    %c3_80 = arith.constant 3 : index
    %303 = memref.load %arg5[%c3_80] : memref<8xi32, #tpu.memory_space<smem>>
    memref.store %302, %arg5[%c3_80] : memref<8xi32, #tpu.memory_space<smem>>
    %304 = arith.index_cast %302 : i32 to index
    %c0_81 = arith.constant 0 : index
    %305 = vector.load %arg2[%304, %c0_81] : memref<64x128xf32, #tpu.memory_space<vmem>>, vector<1x128xf32>
    %306 = arith.addf %305, %290 : vector<1x128xf32>
    %307 = vector.extract_strided_slice %306 {offsets = [0, 0], sizes = [1, 32], strides = [1, 1]} : vector<1x128xf32> to vector<1x32xf32>
    %308 = arith.negf %307 : vector<1x32xf32>
    %309 = math.exp %308 : vector<1x32xf32>
    %cst_82 = arith.constant 1.000000e+00 : f32
    %310 = vector.broadcast %cst_82 : f32 to vector<1x32xf32>
    %311 = arith.addf %310, %309 : vector<1x32xf32>
    %312 = arith.divf %310, %311 : vector<1x32xf32>
    %313 = vector.extract_strided_slice %306 {offsets = [0, 32], sizes = [1, 32], strides = [1, 1]} : vector<1x128xf32> to vector<1x32xf32>
    %314 = arith.negf %313 : vector<1x32xf32>
    %315 = math.exp %314 : vector<1x32xf32>
    %cst_83 = arith.constant 1.000000e+00 : f32
    %316 = vector.broadcast %cst_83 : f32 to vector<1x32xf32>
    %317 = arith.addf %316, %315 : vector<1x32xf32>
    %318 = arith.divf %316, %317 : vector<1x32xf32>
    %319 = vector.extract_strided_slice %306 {offsets = [0, 64], sizes = [1, 32], strides = [1, 1]} : vector<1x128xf32> to vector<1x32xf32>
    %320 = math.tanh %319 : vector<1x32xf32>
    %321 = vector.extract_strided_slice %306 {offsets = [0, 96], sizes = [1, 32], strides = [1, 1]} : vector<1x128xf32> to vector<1x32xf32>
    %322 = arith.negf %321 : vector<1x32xf32>
    %323 = math.exp %322 : vector<1x32xf32>
    %cst_84 = arith.constant 1.000000e+00 : f32
    %324 = vector.broadcast %cst_84 : f32 to vector<1x32xf32>
    %325 = arith.addf %324, %323 : vector<1x32xf32>
    %326 = arith.divf %324, %325 : vector<1x32xf32>
    %327 = arith.mulf %318, %285 : vector<1x32xf32>
    %328 = arith.mulf %312, %320 : vector<1x32xf32>
    %329 = arith.addf %327, %328 : vector<1x32xf32>
    %330 = math.tanh %329 : vector<1x32xf32>
    %331 = arith.mulf %326, %330 : vector<1x32xf32>
    %c0_85 = arith.constant 0 : index
    %c0_86 = arith.constant 0 : index
    %332 = vector.load %arg3[%c0_85, %c0_86] : memref<32x256xf32, #tpu.memory_space<vmem>>, vector<32x256xf32>
    %cst_87 = arith.constant dense<0.000000e+00> : vector<1x256xf32>
    %333 = tpu.matmul %331, %332, %cst_87 {dimension_numbers = #tpu.dot_dimension_numbers<[1], [0], [0], [1], [0, 0, 1, 1], [], []>} : vector<1x32xf32>, vector<32x256xf32>, vector<1x256xf32> -> vector<1x256xf32>
    %334 = vector.extract_strided_slice %333 {offsets = [0, 0], sizes = [1, 128], strides = [1, 1]} : vector<1x256xf32> to vector<1x128xf32>
    %335 = vector.extract_strided_slice %333 {offsets = [0, 128], sizes = [1, 128], strides = [1, 1]} : vector<1x256xf32> to vector<1x128xf32>
    %c0_88 = arith.constant 0 : index
    %c0_89 = arith.constant 0 : index
    %336 = vector.load %arg4[%c0_88, %c0_89] : memref<1x128xf32, #tpu.memory_space<vmem>>, vector<1x128xf32>
    %337 = arith.addf %335, %336 : vector<1x128xf32>
    %cst_90 = arith.constant dense<0xFF800000> : vector<1xf32>
    %338 = vector.multi_reduction <maximumf>, %337, %cst_90 [1] : vector<1x128xf32> to vector<1xf32>
    %339 = vector.shape_cast %338 : vector<1xf32> to vector<1x1xf32>
    %340 = vector.broadcast %339 : vector<1x1xf32> to vector<1x128xf32>
    %341 = arith.cmpf oge, %337, %340 : vector<1x128xf32>
    %c128_i32_91 = arith.constant 128 : i32
    %342 = vector.broadcast %c128_i32_91 : i32 to vector<1x128xi32>
    %343 = arith.select %341, %126, %342 : vector<1x128xi1>, vector<1x128xi32>
    %cst_92 = arith.constant dense<2147483647> : vector<1xi32>
    %344 = vector.multi_reduction <minsi>, %343, %cst_92 [1] : vector<1x128xi32> to vector<1xi32>
    %345 = vector.shape_cast %344 : vector<1xi32> to vector<1x1xi32>
    %346 = vector.extract %345[0, 0] : i32 from vector<1x1xi32>
    %c4 = arith.constant 4 : index
    %347 = memref.load %arg5[%c4] : memref<8xi32, #tpu.memory_space<smem>>
    memref.store %346, %arg5[%c4] : memref<8xi32, #tpu.memory_space<smem>>
    %348 = arith.index_cast %346 : i32 to index
    %c0_93 = arith.constant 0 : index
    %349 = vector.load %arg2[%348, %c0_93] : memref<64x128xf32, #tpu.memory_space<vmem>>, vector<1x128xf32>
    %350 = arith.addf %349, %334 : vector<1x128xf32>
    %351 = vector.extract_strided_slice %350 {offsets = [0, 0], sizes = [1, 32], strides = [1, 1]} : vector<1x128xf32> to vector<1x32xf32>
    %352 = arith.negf %351 : vector<1x32xf32>
    %353 = math.exp %352 : vector<1x32xf32>
    %cst_94 = arith.constant 1.000000e+00 : f32
    %354 = vector.broadcast %cst_94 : f32 to vector<1x32xf32>
    %355 = arith.addf %354, %353 : vector<1x32xf32>
    %356 = arith.divf %354, %355 : vector<1x32xf32>
    %357 = vector.extract_strided_slice %350 {offsets = [0, 32], sizes = [1, 32], strides = [1, 1]} : vector<1x128xf32> to vector<1x32xf32>
    %358 = arith.negf %357 : vector<1x32xf32>
    %359 = math.exp %358 : vector<1x32xf32>
    %cst_95 = arith.constant 1.000000e+00 : f32
    %360 = vector.broadcast %cst_95 : f32 to vector<1x32xf32>
    %361 = arith.addf %360, %359 : vector<1x32xf32>
    %362 = arith.divf %360, %361 : vector<1x32xf32>
    %363 = vector.extract_strided_slice %350 {offsets = [0, 64], sizes = [1, 32], strides = [1, 1]} : vector<1x128xf32> to vector<1x32xf32>
    %364 = math.tanh %363 : vector<1x32xf32>
    %365 = vector.extract_strided_slice %350 {offsets = [0, 96], sizes = [1, 32], strides = [1, 1]} : vector<1x128xf32> to vector<1x32xf32>
    %366 = arith.negf %365 : vector<1x32xf32>
    %367 = math.exp %366 : vector<1x32xf32>
    %cst_96 = arith.constant 1.000000e+00 : f32
    %368 = vector.broadcast %cst_96 : f32 to vector<1x32xf32>
    %369 = arith.addf %368, %367 : vector<1x32xf32>
    %370 = arith.divf %368, %369 : vector<1x32xf32>
    %371 = arith.mulf %362, %329 : vector<1x32xf32>
    %372 = arith.mulf %356, %364 : vector<1x32xf32>
    %373 = arith.addf %371, %372 : vector<1x32xf32>
    %374 = math.tanh %373 : vector<1x32xf32>
    %375 = arith.mulf %370, %374 : vector<1x32xf32>
    %c0_97 = arith.constant 0 : index
    %c0_98 = arith.constant 0 : index
    %376 = vector.load %arg3[%c0_97, %c0_98] : memref<32x256xf32, #tpu.memory_space<vmem>>, vector<32x256xf32>
    %cst_99 = arith.constant dense<0.000000e+00> : vector<1x256xf32>
    %377 = tpu.matmul %375, %376, %cst_99 {dimension_numbers = #tpu.dot_dimension_numbers<[1], [0], [0], [1], [0, 0, 1, 1], [], []>} : vector<1x32xf32>, vector<32x256xf32>, vector<1x256xf32> -> vector<1x256xf32>
    %378 = vector.extract_strided_slice %377 {offsets = [0, 0], sizes = [1, 128], strides = [1, 1]} : vector<1x256xf32> to vector<1x128xf32>
    %379 = vector.extract_strided_slice %377 {offsets = [0, 128], sizes = [1, 128], strides = [1, 1]} : vector<1x256xf32> to vector<1x128xf32>
    %c0_100 = arith.constant 0 : index
    %c0_101 = arith.constant 0 : index
    %380 = vector.load %arg4[%c0_100, %c0_101] : memref<1x128xf32, #tpu.memory_space<vmem>>, vector<1x128xf32>
    %381 = arith.addf %379, %380 : vector<1x128xf32>
    %cst_102 = arith.constant dense<0xFF800000> : vector<1xf32>
    %382 = vector.multi_reduction <maximumf>, %381, %cst_102 [1] : vector<1x128xf32> to vector<1xf32>
    %383 = vector.shape_cast %382 : vector<1xf32> to vector<1x1xf32>
    %384 = vector.broadcast %383 : vector<1x1xf32> to vector<1x128xf32>
    %385 = arith.cmpf oge, %381, %384 : vector<1x128xf32>
    %c128_i32_103 = arith.constant 128 : i32
    %386 = vector.broadcast %c128_i32_103 : i32 to vector<1x128xi32>
    %387 = arith.select %385, %126, %386 : vector<1x128xi1>, vector<1x128xi32>
    %cst_104 = arith.constant dense<2147483647> : vector<1xi32>
    %388 = vector.multi_reduction <minsi>, %387, %cst_104 [1] : vector<1x128xi32> to vector<1xi32>
    %389 = vector.shape_cast %388 : vector<1xi32> to vector<1x1xi32>
    %390 = vector.extract %389[0, 0] : i32 from vector<1x1xi32>
    %c5 = arith.constant 5 : index
    %391 = memref.load %arg5[%c5] : memref<8xi32, #tpu.memory_space<smem>>
    memref.store %390, %arg5[%c5] : memref<8xi32, #tpu.memory_space<smem>>
    %392 = arith.index_cast %390 : i32 to index
    %c0_105 = arith.constant 0 : index
    %393 = vector.load %arg2[%392, %c0_105] : memref<64x128xf32, #tpu.memory_space<vmem>>, vector<1x128xf32>
    %394 = arith.addf %393, %378 : vector<1x128xf32>
    %395 = vector.extract_strided_slice %394 {offsets = [0, 0], sizes = [1, 32], strides = [1, 1]} : vector<1x128xf32> to vector<1x32xf32>
    %396 = arith.negf %395 : vector<1x32xf32>
    %397 = math.exp %396 : vector<1x32xf32>
    %cst_106 = arith.constant 1.000000e+00 : f32
    %398 = vector.broadcast %cst_106 : f32 to vector<1x32xf32>
    %399 = arith.addf %398, %397 : vector<1x32xf32>
    %400 = arith.divf %398, %399 : vector<1x32xf32>
    %401 = vector.extract_strided_slice %394 {offsets = [0, 32], sizes = [1, 32], strides = [1, 1]} : vector<1x128xf32> to vector<1x32xf32>
    %402 = arith.negf %401 : vector<1x32xf32>
    %403 = math.exp %402 : vector<1x32xf32>
    %cst_107 = arith.constant 1.000000e+00 : f32
    %404 = vector.broadcast %cst_107 : f32 to vector<1x32xf32>
    %405 = arith.addf %404, %403 : vector<1x32xf32>
    %406 = arith.divf %404, %405 : vector<1x32xf32>
    %407 = vector.extract_strided_slice %394 {offsets = [0, 64], sizes = [1, 32], strides = [1, 1]} : vector<1x128xf32> to vector<1x32xf32>
    %408 = math.tanh %407 : vector<1x32xf32>
    %409 = vector.extract_strided_slice %394 {offsets = [0, 96], sizes = [1, 32], strides = [1, 1]} : vector<1x128xf32> to vector<1x32xf32>
    %410 = arith.negf %409 : vector<1x32xf32>
    %411 = math.exp %410 : vector<1x32xf32>
    %cst_108 = arith.constant 1.000000e+00 : f32
    %412 = vector.broadcast %cst_108 : f32 to vector<1x32xf32>
    %413 = arith.addf %412, %411 : vector<1x32xf32>
    %414 = arith.divf %412, %413 : vector<1x32xf32>
    %415 = arith.mulf %406, %373 : vector<1x32xf32>
    %416 = arith.mulf %400, %408 : vector<1x32xf32>
    %417 = arith.addf %415, %416 : vector<1x32xf32>
    %418 = math.tanh %417 : vector<1x32xf32>
    %419 = arith.mulf %414, %418 : vector<1x32xf32>
    %c0_109 = arith.constant 0 : index
    %c0_110 = arith.constant 0 : index
    %420 = vector.load %arg3[%c0_109, %c0_110] : memref<32x256xf32, #tpu.memory_space<vmem>>, vector<32x256xf32>
    %cst_111 = arith.constant dense<0.000000e+00> : vector<1x256xf32>
    %421 = tpu.matmul %419, %420, %cst_111 {dimension_numbers = #tpu.dot_dimension_numbers<[1], [0], [0], [1], [0, 0, 1, 1], [], []>} : vector<1x32xf32>, vector<32x256xf32>, vector<1x256xf32> -> vector<1x256xf32>
    %422 = vector.extract_strided_slice %421 {offsets = [0, 0], sizes = [1, 128], strides = [1, 1]} : vector<1x256xf32> to vector<1x128xf32>
    %423 = vector.extract_strided_slice %421 {offsets = [0, 128], sizes = [1, 128], strides = [1, 1]} : vector<1x256xf32> to vector<1x128xf32>
    %c0_112 = arith.constant 0 : index
    %c0_113 = arith.constant 0 : index
    %424 = vector.load %arg4[%c0_112, %c0_113] : memref<1x128xf32, #tpu.memory_space<vmem>>, vector<1x128xf32>
    %425 = arith.addf %423, %424 : vector<1x128xf32>
    %cst_114 = arith.constant dense<0xFF800000> : vector<1xf32>
    %426 = vector.multi_reduction <maximumf>, %425, %cst_114 [1] : vector<1x128xf32> to vector<1xf32>
    %427 = vector.shape_cast %426 : vector<1xf32> to vector<1x1xf32>
    %428 = vector.broadcast %427 : vector<1x1xf32> to vector<1x128xf32>
    %429 = arith.cmpf oge, %425, %428 : vector<1x128xf32>
    %c128_i32_115 = arith.constant 128 : i32
    %430 = vector.broadcast %c128_i32_115 : i32 to vector<1x128xi32>
    %431 = arith.select %429, %126, %430 : vector<1x128xi1>, vector<1x128xi32>
    %cst_116 = arith.constant dense<2147483647> : vector<1xi32>
    %432 = vector.multi_reduction <minsi>, %431, %cst_116 [1] : vector<1x128xi32> to vector<1xi32>
    %433 = vector.shape_cast %432 : vector<1xi32> to vector<1x1xi32>
    %434 = vector.extract %433[0, 0] : i32 from vector<1x1xi32>
    %c6 = arith.constant 6 : index
    %435 = memref.load %arg5[%c6] : memref<8xi32, #tpu.memory_space<smem>>
    memref.store %434, %arg5[%c6] : memref<8xi32, #tpu.memory_space<smem>>
    %436 = arith.index_cast %434 : i32 to index
    %c0_117 = arith.constant 0 : index
    %437 = vector.load %arg2[%436, %c0_117] : memref<64x128xf32, #tpu.memory_space<vmem>>, vector<1x128xf32>
    %438 = arith.addf %437, %422 : vector<1x128xf32>
    %439 = vector.extract_strided_slice %438 {offsets = [0, 0], sizes = [1, 32], strides = [1, 1]} : vector<1x128xf32> to vector<1x32xf32>
    %440 = arith.negf %439 : vector<1x32xf32>
    %441 = math.exp %440 : vector<1x32xf32>
    %cst_118 = arith.constant 1.000000e+00 : f32
    %442 = vector.broadcast %cst_118 : f32 to vector<1x32xf32>
    %443 = arith.addf %442, %441 : vector<1x32xf32>
    %444 = arith.divf %442, %443 : vector<1x32xf32>
    %445 = vector.extract_strided_slice %438 {offsets = [0, 32], sizes = [1, 32], strides = [1, 1]} : vector<1x128xf32> to vector<1x32xf32>
    %446 = arith.negf %445 : vector<1x32xf32>
    %447 = math.exp %446 : vector<1x32xf32>
    %cst_119 = arith.constant 1.000000e+00 : f32
    %448 = vector.broadcast %cst_119 : f32 to vector<1x32xf32>
    %449 = arith.addf %448, %447 : vector<1x32xf32>
    %450 = arith.divf %448, %449 : vector<1x32xf32>
    %451 = vector.extract_strided_slice %438 {offsets = [0, 64], sizes = [1, 32], strides = [1, 1]} : vector<1x128xf32> to vector<1x32xf32>
    %452 = math.tanh %451 : vector<1x32xf32>
    %453 = vector.extract_strided_slice %438 {offsets = [0, 96], sizes = [1, 32], strides = [1, 1]} : vector<1x128xf32> to vector<1x32xf32>
    %454 = arith.negf %453 : vector<1x32xf32>
    %455 = math.exp %454 : vector<1x32xf32>
    %cst_120 = arith.constant 1.000000e+00 : f32
    %456 = vector.broadcast %cst_120 : f32 to vector<1x32xf32>
    %457 = arith.addf %456, %455 : vector<1x32xf32>
    %458 = arith.divf %456, %457 : vector<1x32xf32>
    %459 = arith.mulf %450, %417 : vector<1x32xf32>
    %460 = arith.mulf %444, %452 : vector<1x32xf32>
    %461 = arith.addf %459, %460 : vector<1x32xf32>
    %462 = math.tanh %461 : vector<1x32xf32>
    %463 = arith.mulf %458, %462 : vector<1x32xf32>
    %c0_121 = arith.constant 0 : index
    %c0_122 = arith.constant 0 : index
    %464 = vector.load %arg3[%c0_121, %c0_122] : memref<32x256xf32, #tpu.memory_space<vmem>>, vector<32x256xf32>
    %cst_123 = arith.constant dense<0.000000e+00> : vector<1x256xf32>
    %465 = tpu.matmul %463, %464, %cst_123 {dimension_numbers = #tpu.dot_dimension_numbers<[1], [0], [0], [1], [0, 0, 1, 1], [], []>} : vector<1x32xf32>, vector<32x256xf32>, vector<1x256xf32> -> vector<1x256xf32>
    %466 = vector.extract_strided_slice %465 {offsets = [0, 128], sizes = [1, 128], strides = [1, 1]} : vector<1x256xf32> to vector<1x128xf32>
    %c0_124 = arith.constant 0 : index
    %c0_125 = arith.constant 0 : index
    %467 = vector.load %arg4[%c0_124, %c0_125] : memref<1x128xf32, #tpu.memory_space<vmem>>, vector<1x128xf32>
    %468 = arith.addf %466, %467 : vector<1x128xf32>
    %cst_126 = arith.constant dense<0xFF800000> : vector<1xf32>
    %469 = vector.multi_reduction <maximumf>, %468, %cst_126 [1] : vector<1x128xf32> to vector<1xf32>
    %470 = vector.shape_cast %469 : vector<1xf32> to vector<1x1xf32>
    %471 = vector.broadcast %470 : vector<1x1xf32> to vector<1x128xf32>
    %472 = arith.cmpf oge, %468, %471 : vector<1x128xf32>
    %c128_i32_127 = arith.constant 128 : i32
    %473 = vector.broadcast %c128_i32_127 : i32 to vector<1x128xi32>
    %474 = arith.select %472, %126, %473 : vector<1x128xi1>, vector<1x128xi32>
    %cst_128 = arith.constant dense<2147483647> : vector<1xi32>
    %475 = vector.multi_reduction <minsi>, %474, %cst_128 [1] : vector<1x128xi32> to vector<1xi32>
    %476 = vector.shape_cast %475 : vector<1xi32> to vector<1x1xi32>
    %477 = vector.extract %476[0, 0] : i32 from vector<1x1xi32>
    %c7 = arith.constant 7 : index
    %478 = memref.load %arg5[%c7] : memref<8xi32, #tpu.memory_space<smem>>
    memref.store %477, %arg5[%c7] : memref<8xi32, #tpu.memory_space<smem>>
    return
  }
}

</mosaic_0001>

<llo_original>
// kernel: inference_wrapper_forward.1
$region0: #{inference_wrapper_forward.1}
  #allocation0 [shape = 'u32[]', space=smem, size = 0x4, offset = 0x4, fixed_abs, tag = 'smem constant byte address 0x4 - core index']
  #allocation1 [shape = 'u32[72,128]{1,0:T(1,128)}', space=vmem, size = 0x9000, scoped, tag = 'internal scratch']
  #allocation2 [shape = 's32[1]{0:T(128)S(6)}', space=smem, size = 0x200, scoped, tag = 'scoped memory for inference_wrapper_forward.1']
  %s0 = inlined_call_operand.vmem [shape: s32[4], index: 0, kind: input, shape index: {}]
  %s1 = inlined_call_operand.<no memory space> [shape: s32[1], index: 1, kind: input, shape index: {}]
  %s2 = inlined_call_operand.vmem [shape: f32[64,128], index: 2, kind: input, shape index: {}]
  %s3 = inlined_call_operand.vmem [shape: f32[32,256], index: 3, kind: input, shape index: {}]
  %s4 = inlined_call_operand.vmem [shape: f32[1,128], index: 4, kind: input, shape index: {}]
  %s5 = inlined_call_operand.hbm [shape: s32[8], index: 5, kind: output, shape index: {}]
  %s6 = sld [smem:[#allocation0]]
  $region34: #{inference_wrapper_forward.1} parent=0
    _
  %s8 = ssub.s32 1, %s6
  %s9 = scalar_select 0, %s8, %s6
  %10 = sst [smem:[#allocation2]] %s1
  $region1: #{inference_wrapper_forward.1} parent=0
    #allocation3 [shape = 'u8[512]{0}', space=smem, size = 0x200, scoped, tag = 'input window, operand 0, single buffered']
    #allocation4 [shape = 's32[1]{0}', space=sflag, size = 0x4, scoped, tag = 'scoped memory for inference_wrapper_forward.1']
    #allocation5 [shape = 's32[1]{0}', space=sflag, size = 0x4, scoped, tag = 'scoped memory for inference_wrapper_forward.1']
    #allocation6 [shape = 'u8[512]{0}', space=smem, size = 0x200, scoped, tag = 'output window, operand 0, single buffered']
    %11 = vsyncpa [#allocation5], 0
    %12 = vsyncpa [#allocation4], 0
    // Predicated region
    $region2: #{inference_wrapper_forward.1} parent=1 // pred_check
      _
    $region3: #{inference_wrapper_forward.1} parent=1 // pred_check_branch
      %14 = sbr.rel (0) target = $region5
    $region4: #{inference_wrapper_forward.1} parent=1 // pred_region
      %16 = vsyncadd [#allocation5], 0
      %s18 = sshll.u32 %s0, 4
      %s19 = int_to_ptr.vmem [resolvable:$true] %s18
      %21 = dma.vmem_to_smem %s19, 16, [#allocation3], [#allocation5]
    $region5: #{inference_wrapper_forward.1} parent=1 // pred_fallthru
      _
    // Predicated region
    $region6: #{inference_wrapper_forward.1} parent=1 // pred_check
      _
    $region7: #{inference_wrapper_forward.1} parent=1 // pred_check_branch
      %23 = sbr.rel (0) target = $region9
    $region8: #{inference_wrapper_forward.1} parent=1 // pred_region
      _
    $region9: #{inference_wrapper_forward.1} parent=1 // pred_fallthru
      _
    // Predicated region
    $region10: #{inference_wrapper_forward.1} parent=1 // pred_check
      _
    $region11: #{inference_wrapper_forward.1} parent=1 // pred_check_branch
      %25 = sbr.rel (0) target = $region13
    $region12: #{inference_wrapper_forward.1} parent=1 // pred_region
      _
    $region13: #{inference_wrapper_forward.1} parent=1 // pred_fallthru
      _
    // Predicated region
    $region14: #{inference_wrapper_forward.1} parent=1 // pred_check
      _
    $region15: #{inference_wrapper_forward.1} parent=1 // pred_check_branch
      %27 = sbr.rel (0) target = $region17
    $region16: #{inference_wrapper_forward.1} parent=1 // pred_region
      _
    $region17: #{inference_wrapper_forward.1} parent=1 // pred_fallthru
      _
    // Predicated region
    $region18: #{inference_wrapper_forward.1} parent=1 // pred_check
      _
    $region19: #{inference_wrapper_forward.1} parent=1 // pred_check_branch
      %29 = sbr.rel (0) target = $region21
    $region20: #{inference_wrapper_forward.1} parent=1 // pred_region
      _
    $region21: #{inference_wrapper_forward.1} parent=1 // pred_fallthru
      _
    // Predicated region
    $region22: #{inference_wrapper_forward.1} parent=1 // pred_check
      _
    $region23: #{inference_wrapper_forward.1} parent=1 // pred_check_branch
      %31 = sbr.rel (0) target = $region25
    $region24: #{inference_wrapper_forward.1} parent=1 // pred_region
      %33 = dma.done [#allocation5], 16
    $region25: #{inference_wrapper_forward.1} parent=1 // pred_fallthru
      _
    %34 = sfence
    %s35 = sld [smem:[#allocation3]]
    %s36 = scalar_lea.vmem %s2, %s35
    %v37 = vld [vmem:[%s36] sm:$0x1]
    %v38 = vadd.f32 %v37, 0.0
    %v39 = vxor.u32 %v38, 2147483648
    %v40 = vmul.f32 %v39, 1.442695
    %v41 = vpow.pop %v40
    %v42 = vadd.f32 %v41, 1.0
    %v43 = vrcp.pop %v42
    %v44 = vmul.f32 %v42, %v43
    %v45 = vsub.f32 1.0, %v44
    %v46 = vmul.f32 %v43, %v45
    %v47 = vadd.f32 %v43, %v46
    %vm48 = vweird.f32 %v42
    %vm49 = vweird.f32 %v43
    %vm50 = vmor %vm48, %vm49
    %v51 = vsel %vm50, %v43, %v47
    %v52 = vand.u32 2147483647, %v42
    %vm53 = vcmp.eq.f32.partialorder %v52, 8.507059e+37
    %v54 = vand.u32 %v42, 2147483648
    %v55 = vor.u32 1.1754944e-38, %v54
    %v56 = vsel %vm53, %v55, %v51
    %v57 = vmul.f32 1.0, %v56
    %v58 = vtanh.pop %v38
    %v59 = vmul.f32 %v57, 0.0
    %61 = vrot.lane.b32.xlu0 %v58, 64
    %v62 = vpop.permute.xlu0 %61
    %v64 = vmul.f32 %v57, %v62
    %66 = vrot.lane.b32.xlu0 %v64, 32
    %v67 = vpop.permute.xlu0 %66
    %v69 = vadd.f32 %v59, %v67
    %v70 = vtanh.pop %v69
    %72 = vrot.lane.b32.xlu0 %v70, 64
    %v73 = vpop.permute.xlu0 %72
    %v75 = vmul.f32 %v57, %v73
    %v76 = vld [vmem:[%s3] sm:$0xff]
    %v77 = vld [vmem:[%s3 + $0x10] sm:$0xff]
    %v78 = vld [vmem:[%s3 + $0x20] sm:$0xff]
    %v79 = vld [vmem:[%s3 + $0x30] sm:$0xff]
    %81 = vrot.lane.b32.xlu0 %v75, 32
    %v82 = vpop.permute.xlu0 %81
    %vm83 = vcmask 261120
    %v84 = vsel %vm83, %v82, 0
    %86 = vmatpush.msra.mxu0 0.0
    %87 = vmatpush.msra.mxu0 0.0
    %88 = vmatpush.msra.mxu0 0.0
    %89 = vmatpush.msra.mxu0 0.0
    %90 = vmatpush.msra.mxu0 0.0
    %91 = vmatpush.msra.mxu0 0.0
    %92 = vmatpush.msra.mxu0 0.0
    %93 = vmatpush.msra.mxu0 0.0
    %94 = vmatpush.msra.mxu0 0.0
    %95 = vmatpush.msra.mxu0 0.0
    %96 = vmatpush.msra.mxu0 0.0
    %97 = vmatpush.msra.mxu0 0.0
    %98 = vmatpush.msra.mxu0 %v79
    %99 = vmatpush.msra.mxu0 %v78
    %100 = vmatpush.msra.mxu0 %v77
    %101 = vmatpush.msra.mxu0 %v76
    %102 = vmatmul.f32.gmra.mxu0 %v84
    %v103 = vpop.f32.mrf.mxu0
    %v104 = vadd.f32 0.0, %v103
    %105 = vdwg.mxu0
    %s106 = sld [smem:[#allocation3 + $0x1]]
    %s107 = scalar_lea.vmem %s2, %s106
    %v108 = vld [vmem:[%s107] sm:$0x1]
    %v109 = vadd.f32 %v108, %v104
    %v110 = vxor.u32 %v109, 2147483648
    %v111 = vmul.f32 %v110, 1.442695
    %v112 = vpow.pop %v111
    %v113 = vadd.f32 %v112, 1.0
    %v114 = vrcp.pop %v113
    %v115 = vmul.f32 %v113, %v114
    %v116 = vsub.f32 1.0, %v115
    %v117 = vmul.f32 %v114, %v116
    %v118 = vadd.f32 %v114, %v117
    %vm119 = vweird.f32 %v113
    %vm120 = vweird.f32 %v114
    %vm121 = vmor %vm119, %vm120
    %v122 = vsel %vm121, %v114, %v118
    %v123 = vand.u32 2147483647, %v113
    %vm124 = vcmp.eq.f32.partialorder %v123, 8.507059e+37
    %v125 = vand.u32 %v113, 2147483648
    %v126 = vor.u32 1.1754944e-38, %v125
    %v127 = vsel %vm124, %v126, %v122
    %v128 = vmul.f32 1.0, %v127
    %v129 = vtanh.pop %v109
    %v130 = vmul.f32 %v128, %v69
    %132 = vrot.lane.b32.xlu0 %v129, 64
    %v133 = vpop.permute.xlu0 %132
    %v135 = vmul.f32 %v128, %v133
    %137 = vrot.lane.b32.xlu0 %v135, 32
    %v138 = vpop.permute.xlu0 %137
    %v140 = vadd.f32 %v130, %v138
    %v141 = vtanh.pop %v140
    %143 = vrot.lane.b32.xlu0 %v141, 64
    %v144 = vpop.permute.xlu0 %143
    %v146 = vmul.f32 %v128, %v144
    %148 = vrot.lane.b32.xlu0 %v146, 32
    %v149 = vpop.permute.xlu0 %148
    %v150 = vsel %vm83, %v149, 0
    %152 = vmatpush.msra.mxu0 0.0
    %153 = vmatpush.msra.mxu0 0.0
    %154 = vmatpush.msra.mxu0 0.0
    %155 = vmatpush.msra.mxu0 0.0
    %156 = vmatpush.msra.mxu0 0.0
    %157 = vmatpush.msra.mxu0 0.0
    %158 = vmatpush.msra.mxu0 0.0
    %159 = vmatpush.msra.mxu0 0.0
    %160 = vmatpush.msra.mxu0 0.0
    %161 = vmatpush.msra.mxu0 0.0
    %162 = vmatpush.msra.mxu0 0.0
    %163 = vmatpush.msra.mxu0 0.0
    %164 = vmatpush.msra.mxu0 %v79
    %165 = vmatpush.msra.mxu0 %v78
    %166 = vmatpush.msra.mxu0 %v77
    %167 = vmatpush.msra.mxu0 %v76
    %168 = vmatmul.f32.gmra.mxu0 %v150
    %v169 = vpop.f32.mrf.mxu0
    %v170 = vadd.f32 0.0, %v169
    %171 = vdwg.mxu0
    %s172 = sld [smem:[#allocation3 + $0x2]]
    %s173 = scalar_lea.vmem %s2, %s172
    %v174 = vld [vmem:[%s173] sm:$0x1]
    %v175 = vadd.f32 %v174, %v170
    %v176 = vxor.u32 %v175, 2147483648
    %v177 = vmul.f32 %v176, 1.442695
    %v178 = vpow.pop %v177
    %v179 = vadd.f32 %v178, 1.0
    %v180 = vrcp.pop %v179
    %v181 = vmul.f32 %v179, %v180
    %v182 = vsub.f32 1.0, %v181
    %v183 = vmul.f32 %v180, %v182
    %v184 = vadd.f32 %v180, %v183
    %vm185 = vweird.f32 %v179
    %vm186 = vweird.f32 %v180
    %vm187 = vmor %vm185, %vm186
    %v188 = vsel %vm187, %v180, %v184
    %v189 = vand.u32 2147483647, %v179
    %vm190 = vcmp.eq.f32.partialorder %v189, 8.507059e+37
    %v191 = vand.u32 %v179, 2147483648
    %v192 = vor.u32 1.1754944e-38, %v191
    %v193 = vsel %vm190, %v192, %v188
    %v194 = vmul.f32 1.0, %v193
    %v195 = vtanh.pop %v175
    %v196 = vmul.f32 %v194, %v140
    %198 = vrot.lane.b32.xlu0 %v195, 64
    %v199 = vpop.permute.xlu0 %198
    %v201 = vmul.f32 %v194, %v199
    %203 = vrot.lane.b32.xlu0 %v201, 32
    %v204 = vpop.permute.xlu0 %203
    %v206 = vadd.f32 %v196, %v204
    %v207 = vtanh.pop %v206
    %209 = vrot.lane.b32.xlu0 %v207, 64
    %v210 = vpop.permute.xlu0 %209
    %v212 = vmul.f32 %v194, %v210
    %214 = vrot.lane.b32.xlu0 %v212, 32
    %v215 = vpop.permute.xlu0 %214
    %v216 = vsel %vm83, %v215, 0
    %218 = vmatpush.msra.mxu0 0.0
    %219 = vmatpush.msra.mxu0 0.0
    %220 = vmatpush.msra.mxu0 0.0
    %221 = vmatpush.msra.mxu0 0.0
    %222 = vmatpush.msra.mxu0 0.0
    %223 = vmatpush.msra.mxu0 0.0
    %224 = vmatpush.msra.mxu0 0.0
    %225 = vmatpush.msra.mxu0 0.0
    %226 = vmatpush.msra.mxu0 0.0
    %227 = vmatpush.msra.mxu0 0.0
    %228 = vmatpush.msra.mxu0 0.0
    %229 = vmatpush.msra.mxu0 0.0
    %230 = vmatpush.msra.mxu0 %v79
    %231 = vmatpush.msra.mxu0 %v78
    %232 = vmatpush.msra.mxu0 %v77
    %233 = vmatpush.msra.mxu0 %v76
    %234 = vmatmul.f32.gmra.mxu0 %v216
    %v235 = vpop.f32.mrf.mxu0
    %v236 = vadd.f32 0.0, %v235
    %237 = vdwg.mxu0
    %s238 = sld [smem:[#allocation3 + $0x3]]
    %s239 = scalar_lea.vmem %s2, %s238
    %v240 = vld [vmem:[%s239] sm:$0x1]
    %v241 = vadd.f32 %v240, %v236
    %v242 = vxor.u32 %v241, 2147483648
    %v243 = vmul.f32 %v242, 1.442695
    %v244 = vpow.pop %v243
    %v245 = vadd.f32 %v244, 1.0
    %v246 = vrcp.pop %v245
    %v247 = vmul.f32 %v245, %v246
    %v248 = vsub.f32 1.0, %v247
    %v249 = vmul.f32 %v246, %v248
    %v250 = vadd.f32 %v246, %v249
    %vm251 = vweird.f32 %v245
    %vm252 = vweird.f32 %v246
    %vm253 = vmor %vm251, %vm252
    %v254 = vsel %vm253, %v246, %v250
    %v255 = vand.u32 2147483647, %v245
    %vm256 = vcmp.eq.f32.partialorder %v255, 8.507059e+37
    %v257 = vand.u32 %v245, 2147483648
    %v258 = vor.u32 1.1754944e-38, %v257
    %v259 = vsel %vm256, %v258, %v254
    %v260 = vmul.f32 1.0, %v259
    %v261 = vtanh.pop %v241
    %v262 = vmul.f32 %v260, %v206
    %264 = vrot.lane.b32.xlu0 %v261, 64
    %v265 = vpop.permute.xlu0 %264
    %v267 = vmul.f32 %v260, %v265
    %269 = vrot.lane.b32.xlu0 %v267, 32
    %v270 = vpop.permute.xlu0 %269
    %v272 = vadd.f32 %v262, %v270
    %v273 = vtanh.pop %v272
    %275 = vrot.lane.b32.xlu0 %v273, 64
    %v276 = vpop.permute.xlu0 %275
    %v278 = vmul.f32 %v260, %v276
    %280 = vrot.lane.b32.xlu0 %v278, 32
    %v281 = vpop.permute.xlu0 %280
    %v282 = vsel %vm83, %v281, 0
    %284 = vmatpush.msra.mxu0 0.0
    %285 = vmatpush.msra.mxu0 0.0
    %286 = vmatpush.msra.mxu0 0.0
    %287 = vmatpush.msra.mxu0 0.0
    %288 = vmatpush.msra.mxu0 0.0
    %289 = vmatpush.msra.mxu0 0.0
    %290 = vmatpush.msra.mxu0 0.0
    %291 = vmatpush.msra.mxu0 0.0
    %292 = vmatpush.msra.mxu0 0.0
    %293 = vmatpush.msra.mxu0 0.0
    %294 = vmatpush.msra.mxu0 0.0
    %295 = vmatpush.msra.mxu0 0.0
    %296 = vmatpush.msra.mxu0 %v79
    %297 = vmatpush.msra.mxu0 %v78
    %298 = vmatpush.msra.mxu0 %v77
    %299 = vmatpush.msra.mxu0 %v76
    %300 = vmatmul.f32.gmra.mxu0 %v282
    %v301 = vpop.f32.mrf.mxu0
    %v302 = vadd.f32 0.0, %v301
    %303 = vdwg.mxu0
    %v304 = vlaneseq
    %v305 = vand.u32 %v304, 127
    %s306 = sld [smem:[#allocation2]]
    %s307 = scalar_lea.vmem %s2, %s306
    %v308 = vld [vmem:[%s307] sm:$0x1]
    %v309 = vadd.f32 %v308, %v302
    %v310 = vxor.u32 %v309, 2147483648
    %v311 = vmul.f32 %v310, 1.442695
    %v312 = vpow.pop %v311
    %v313 = vadd.f32 %v312, 1.0
    %v314 = vrcp.pop %v313
    %v315 = vmul.f32 %v313, %v314
    %v316 = vsub.f32 1.0, %v315
    %v317 = vmul.f32 %v314, %v316
    %v318 = vadd.f32 %v314, %v317
    %vm319 = vweird.f32 %v313
    %vm320 = vweird.f32 %v314
    %vm321 = vmor %vm319, %vm320
    %v322 = vsel %vm321, %v314, %v318
    %v323 = vand.u32 2147483647, %v313
    %vm324 = vcmp.eq.f32.partialorder %v323, 8.507059e+37
    %v325 = vand.u32 %v313, 2147483648
    %v326 = vor.u32 1.1754944e-38, %v325
    %v327 = vsel %vm324, %v326, %v322
    %v328 = vmul.f32 1.0, %v327
    %v329 = vtanh.pop %v309
    %v330 = vmul.f32 %v328, %v272
    %332 = vrot.lane.b32.xlu0 %v329, 64
    %v333 = vpop.permute.xlu0 %332
    %v335 = vmul.f32 %v328, %v333
    %337 = vrot.lane.b32.xlu0 %v335, 32
    %v338 = vpop.permute.xlu0 %337
    %v340 = vadd.f32 %v330, %v338
    %v341 = vtanh.pop %v340
    %343 = vrot.lane.b32.xlu0 %v341, 64
    %v344 = vpop.permute.xlu0 %343
    %v346 = vmul.f32 %v328, %v344
    %v347 = vld [vmem:[%s3] sm:$0xff]
    %v348 = vld [vmem:[%s3 + $0x8] sm:$0xff]
    %v349 = vld [vmem:[%s3 + $0x10] sm:$0xff]
    %v350 = vld [vmem:[%s3 + $0x18] sm:$0xff]
    %v351 = vld [vmem:[%s3 + $0x20] sm:$0xff]
    %v352 = vld [vmem:[%s3 + $0x28] sm:$0xff]
    %v353 = vld [vmem:[%s3 + $0x30] sm:$0xff]
    %v354 = vld [vmem:[%s3 + $0x38] sm:$0xff]
    %356 = vrot.lane.b32.xlu0 %v346, 32
    %v357 = vpop.permute.xlu0 %356
    %v358 = vsel %vm83, %v357, 0
    %360 = vmatpush.msra.mxu0 0.0
    %361 = vmatpush.msra.mxu0 0.0
    %362 = vmatpush.msra.mxu0 0.0
    %363 = vmatpush.msra.mxu0 0.0
    %364 = vmatpush.msra.mxu0 0.0
    %365 = vmatpush.msra.mxu0 0.0
    %366 = vmatpush.msra.mxu0 0.0
    %367 = vmatpush.msra.mxu0 0.0
    %368 = vmatpush.msra.mxu0 0.0
    %369 = vmatpush.msra.mxu0 0.0
    %370 = vmatpush.msra.mxu0 0.0
    %371 = vmatpush.msra.mxu0 0.0
    %372 = vmatpush.msra.mxu0 %v353
    %373 = vmatpush.msra.mxu0 %v351
    %374 = vmatpush.msra.mxu0 %v349
    %375 = vmatpush.msra.mxu0 %v347
    %376 = vmatmul.f32.gmra.mxu0 %v358
    %v377 = vpop.f32.mrf.mxu0
    %v378 = vadd.f32 0.0, %v377
    %379 = vdwg.mxu0
    %380 = vmatpush.msra.mxu0 0.0
    %381 = vmatpush.msra.mxu0 0.0
    %382 = vmatpush.msra.mxu0 0.0
    %383 = vmatpush.msra.mxu0 0.0
    %384 = vmatpush.msra.mxu0 0.0
    %385 = vmatpush.msra.mxu0 0.0
    %386 = vmatpush.msra.mxu0 0.0
    %387 = vmatpush.msra.mxu0 0.0
    %388 = vmatpush.msra.mxu0 0.0
    %389 = vmatpush.msra.mxu0 0.0
    %390 = vmatpush.msra.mxu0 0.0
    %391 = vmatpush.msra.mxu0 0.0
    %392 = vmatpush.msra.mxu0 %v354
    %393 = vmatpush.msra.mxu0 %v352
    %394 = vmatpush.msra.mxu0 %v350
    %395 = vmatpush.msra.mxu0 %v348
    %396 = vmatmul.f32.gmra.mxu0 %v358
    %v397 = vpop.f32.mrf.mxu0
    %v398 = vadd.f32 0.0, %v397
    %399 = vdwg.mxu0
    %v400 = vld [vmem:[%s4] sm:$0x1]
    %v401 = vadd.f32 %v398, %v400
    %vm402 = vcmask 1040384
    %v403 = vsel %vm402, %v401, -inf
    %404 = vmax.xlane.f32.xlu0 %v403
    %v405 = vpop.xlane.xlu0 %404
    %vm406 = vcmp.ge.f32.partialorder %v401, %v405
    %v407 = vsel %vm406, %v305, 128
    %v408 = vsel %vm402, %v407, 2147483647
    %v409 = vand.u32 %v408, 65535
    %v410 = vshra.s32 %v408, 16
    %v411 = vcvt.s32.f32 %v409
    %v412 = vcvt.s32.f32 %v410
    %413 = vmin.xlane.f32.xlu0 %v412
    %v414 = vpop.xlane.xlu0 %413
    %vm415 = vcmp.eq.f32.partialorder %v412, %v414
    %v416 = vsel %vm415, %v411, inf
    %417 = vmin.xlane.f32.xlu0 %v416
    %v418 = vpop.xlane.xlu0 %417
    %v419 = vcvt.f32.s32 %v418
    %v420 = vcvt.f32.s32 %v414
    %v421 = vshll.u32 %v420, 16
    %v422 = vadd.s32 %v421, %v419
    %s423 = vtos %v422
    %s424 = scalar_lea.smem [#allocation6], 0
    %425 = sst [smem:[%s424]] %s423
    %s426 = scalar_lea.vmem %s2, %s423
    %v427 = vld [vmem:[%s426] sm:$0x1]
    %v428 = vadd.f32 %v427, %v378
    %v429 = vxor.u32 %v428, 2147483648
    %v430 = vmul.f32 %v429, 1.442695
    %v431 = vpow.pop %v430
    %v432 = vadd.f32 %v431, 1.0
    %v433 = vrcp.pop %v432
    %v434 = vmul.f32 %v432, %v433
    %v435 = vsub.f32 1.0, %v434
    %v436 = vmul.f32 %v433, %v435
    %v437 = vadd.f32 %v433, %v436
    %vm438 = vweird.f32 %v432
    %vm439 = vweird.f32 %v433
    %vm440 = vmor %vm438, %vm439
    %v441 = vsel %vm440, %v433, %v437
    %v442 = vand.u32 2147483647, %v432
    %vm443 = vcmp.eq.f32.partialorder %v442, 8.507059e+37
    %v444 = vand.u32 %v432, 2147483648
    %v445 = vor.u32 1.1754944e-38, %v444
    %v446 = vsel %vm443, %v445, %v441
    %v447 = vmul.f32 1.0, %v446
    %v448 = vtanh.pop %v428
    %v449 = vmul.f32 %v447, %v340
    %451 = vrot.lane.b32.xlu0 %v448, 64
    %v452 = vpop.permute.xlu0 %451
    %v454 = vmul.f32 %v447, %v452
    %456 = vrot.lane.b32.xlu0 %v454, 32
    %v457 = vpop.permute.xlu0 %456
    %v459 = vadd.f32 %v449, %v457
    %v460 = vtanh.pop %v459
    %462 = vrot.lane.b32.xlu0 %v460, 64
    %v463 = vpop.permute.xlu0 %462
    %v465 = vmul.f32 %v447, %v463
    %v466 = vld [vmem:[%s3] sm:$0xff]
    %v467 = vld [vmem:[%s3 + $0x8] sm:$0xff]
    %v468 = vld [vmem:[%s3 + $0x10] sm:$0xff]
    %v469 = vld [vmem:[%s3 + $0x18] sm:$0xff]
    %v470 = vld [vmem:[%s3 + $0x20] sm:$0xff]
    %v471 = vld [vmem:[%s3 + $0x28] sm:$0xff]
    %v472 = vld [vmem:[%s3 + $0x30] sm:$0xff]
    %v473 = vld [vmem:[%s3 + $0x38] sm:$0xff]
    %475 = vrot.lane.b32.xlu0 %v465, 32
    %v476 = vpop.permute.xlu0 %475
    %v477 = vsel %vm83, %v476, 0
    %479 = vmatpush.msra.mxu0 0.0
    %480 = vmatpush.msra.mxu0 0.0
    %481 = vmatpush.msra.mxu0 0.0
    %482 = vmatpush.msra.mxu0 0.0
    %483 = vmatpush.msra.mxu0 0.0
    %484 = vmatpush.msra.mxu0 0.0
    %485 = vmatpush.msra.mxu0 0.0
    %486 = vmatpush.msra.mxu0 0.0
    %487 = vmatpush.msra.mxu0 0.0
    %488 = vmatpush.msra.mxu0 0.0
    %489 = vmatpush.msra.mxu0 0.0
    %490 = vmatpush.msra.mxu0 0.0
    %491 = vmatpush.msra.mxu0 %v472
    %492 = vmatpush.msra.mxu0 %v470
    %493 = vmatpush.msra.mxu0 %v468
    %494 = vmatpush.msra.mxu0 %v466
    %495 = vmatmul.f32.gmra.mxu0 %v477
    %v496 = vpop.f32.mrf.mxu0
    %v497 = vadd.f32 0.0, %v496
    %498 = vdwg.mxu0
    %499 = vmatpush.msra.mxu0 0.0
    %500 = vmatpush.msra.mxu0 0.0
    %501 = vmatpush.msra.mxu0 0.0
    %502 = vmatpush.msra.mxu0 0.0
    %503 = vmatpush.msra.mxu0 0.0
    %504 = vmatpush.msra.mxu0 0.0
    %505 = vmatpush.msra.mxu0 0.0
    %506 = vmatpush.msra.mxu0 0.0
    %507 = vmatpush.msra.mxu0 0.0
    %508 = vmatpush.msra.mxu0 0.0
    %509 = vmatpush.msra.mxu0 0.0
    %510 = vmatpush.msra.mxu0 0.0
    %511 = vmatpush.msra.mxu0 %v473
    %512 = vmatpush.msra.mxu0 %v471
    %513 = vmatpush.msra.mxu0 %v469
    %514 = vmatpush.msra.mxu0 %v467
    %515 = vmatmul.f32.gmra.mxu0 %v477
    %v516 = vpop.f32.mrf.mxu0
    %v517 = vadd.f32 0.0, %v516
    %518 = vdwg.mxu0
    %v519 = vld [vmem:[%s4] sm:$0x1]
    %v520 = vadd.f32 %v517, %v519
    %v521 = vsel %vm402, %v520, -inf
    %522 = vmax.xlane.f32.xlu0 %v521
    %v523 = vpop.xlane.xlu0 %522
    %vm524 = vcmp.ge.f32.partialorder %v520, %v523
    %v525 = vsel %vm524, %v305, 128
    %v526 = vsel %vm402, %v525, 2147483647
    %v527 = vand.u32 %v526, 65535
    %v528 = vshra.s32 %v526, 16
    %v529 = vcvt.s32.f32 %v527
    %v530 = vcvt.s32.f32 %v528
    %531 = vmin.xlane.f32.xlu0 %v530
    %v532 = vpop.xlane.xlu0 %531
    %vm533 = vcmp.eq.f32.partialorder %v530, %v532
    %v534 = vsel %vm533, %v529, inf
    %535 = vmin.xlane.f32.xlu0 %v534
    %v536 = vpop.xlane.xlu0 %535
    %v537 = vcvt.f32.s32 %v536
    %v538 = vcvt.f32.s32 %v532
    %v539 = vshll.u32 %v538, 16
    %v540 = vadd.s32 %v539, %v537
    %s541 = vtos %v540
    %s542 = scalar_lea.smem [#allocation6], 1
    %543 = sst [smem:[%s542]] %s541
    %s544 = scalar_lea.vmem %s2, %s541
    %v545 = vld [vmem:[%s544] sm:$0x1]
    %v546 = vadd.f32 %v545, %v497
    %v547 = vxor.u32 %v546, 2147483648
    %v548 = vmul.f32 %v547, 1.442695
    %v549 = vpow.pop %v548
    %v550 = vadd.f32 %v549, 1.0
    %v551 = vrcp.pop %v550
    %v552 = vmul.f32 %v550, %v551
    %v553 = vsub.f32 1.0, %v552
    %v554 = vmul.f32 %v551, %v553
    %v555 = vadd.f32 %v551, %v554
    %vm556 = vweird.f32 %v550
    %vm557 = vweird.f32 %v551
    %vm558 = vmor %vm556, %vm557
    %v559 = vsel %vm558, %v551, %v555
    %v560 = vand.u32 2147483647, %v550
    %vm561 = vcmp.eq.f32.partialorder %v560, 8.507059e+37
    %v562 = vand.u32 %v550, 2147483648
    %v563 = vor.u32 1.1754944e-38, %v562
    %v564 = vsel %vm561, %v563, %v559
    %v565 = vmul.f32 1.0, %v564
    %v566 = vtanh.pop %v546
    %v567 = vmul.f32 %v565, %v459
    %569 = vrot.lane.b32.xlu0 %v566, 64
    %v570 = vpop.permute.xlu0 %569
    %v572 = vmul.f32 %v565, %v570
    %574 = vrot.lane.b32.xlu0 %v572, 32
    %v575 = vpop.permute.xlu0 %574
    %v577 = vadd.f32 %v567, %v575
    %v578 = vtanh.pop %v577
    %580 = vrot.lane.b32.xlu0 %v578, 64
    %v581 = vpop.permute.xlu0 %580
    %v583 = vmul.f32 %v565, %v581
    %v584 = vld [vmem:[%s3] sm:$0xff]
    %v585 = vld [vmem:[%s3 + $0x8] sm:$0xff]
    %v586 = vld [vmem:[%s3 + $0x10] sm:$0xff]
    %v587 = vld [vmem:[%s3 + $0x18] sm:$0xff]
    %v588 = vld [vmem:[%s3 + $0x20] sm:$0xff]
    %v589 = vld [vmem:[%s3 + $0x28] sm:$0xff]
    %v590 = vld [vmem:[%s3 + $0x30] sm:$0xff]
    %v591 = vld [vmem:[%s3 + $0x38] sm:$0xff]
    %593 = vrot.lane.b32.xlu0 %v583, 32
    %v594 = vpop.permute.xlu0 %593
    %v595 = vsel %vm83, %v594, 0
    %597 = vmatpush.msra.mxu0 0.0
    %598 = vmatpush.msra.mxu0 0.0
    %599 = vmatpush.msra.mxu0 0.0
    %600 = vmatpush.msra.mxu0 0.0
    %601 = vmatpush.msra.mxu0 0.0
    %602 = vmatpush.msra.mxu0 0.0
    %603 = vmatpush.msra.mxu0 0.0
    %604 = vmatpush.msra.mxu0 0.0
    %605 = vmatpush.msra.mxu0 0.0
    %606 = vmatpush.msra.mxu0 0.0
    %607 = vmatpush.msra.mxu0 0.0
    %608 = vmatpush.msra.mxu0 0.0
    %609 = vmatpush.msra.mxu0 %v590
    %610 = vmatpush.msra.mxu0 %v588
    %611 = vmatpush.msra.mxu0 %v586
    %612 = vmatpush.msra.mxu0 %v584
    %613 = vmatmul.f32.gmra.mxu0 %v595
    %v614 = vpop.f32.mrf.mxu0
    %v615 = vadd.f32 0.0, %v614
    %616 = vdwg.mxu0
    %617 = vmatpush.msra.mxu0 0.0
    %618 = vmatpush.msra.mxu0 0.0
    %619 = vmatpush.msra.mxu0 0.0
    %620 = vmatpush.msra.mxu0 0.0
    %621 = vmatpush.msra.mxu0 0.0
    %622 = vmatpush.msra.mxu0 0.0
    %623 = vmatpush.msra.mxu0 0.0
    %624 = vmatpush.msra.mxu0 0.0
    %625 = vmatpush.msra.mxu0 0.0
    %626 = vmatpush.msra.mxu0 0.0
    %627 = vmatpush.msra.mxu0 0.0
    %628 = vmatpush.msra.mxu0 0.0
    %629 = vmatpush.msra.mxu0 %v591
    %630 = vmatpush.msra.mxu0 %v589
    %631 = vmatpush.msra.mxu0 %v587
    %632 = vmatpush.msra.mxu0 %v585
    %633 = vmatmul.f32.gmra.mxu0 %v595
    %v634 = vpop.f32.mrf.mxu0
    %v635 = vadd.f32 0.0, %v634
    %636 = vdwg.mxu0
    %v637 = vld [vmem:[%s4] sm:$0x1]
    %v638 = vadd.f32 %v635, %v637
    %v639 = vsel %vm402, %v638, -inf
    %640 = vmax.xlane.f32.xlu0 %v639
    %v641 = vpop.xlane.xlu0 %640
    %vm642 = vcmp.ge.f32.partialorder %v638, %v641
    %v643 = vsel %vm642, %v305, 128
    %v644 = vsel %vm402, %v643, 2147483647
    %v645 = vand.u32 %v644, 65535
    %v646 = vshra.s32 %v644, 16
    %v647 = vcvt.s32.f32 %v645
    %v648 = vcvt.s32.f32 %v646
    %649 = vmin.xlane.f32.xlu0 %v648
    %v650 = vpop.xlane.xlu0 %649
    %vm651 = vcmp.eq.f32.partialorder %v648, %v650
    %v652 = vsel %vm651, %v647, inf
    %653 = vmin.xlane.f32.xlu0 %v652
    %v654 = vpop.xlane.xlu0 %653
    %v655 = vcvt.f32.s32 %v654
    %v656 = vcvt.f32.s32 %v650
    %v657 = vshll.u32 %v656, 16
    %v658 = vadd.s32 %v657, %v655
    %s659 = vtos %v658
    %s660 = scalar_lea.smem [#allocation6], 2
    %661 = sst [smem:[%s660]] %s659
    %s662 = scalar_lea.vmem %s2, %s659
    %v663 = vld [vmem:[%s662] sm:$0x1]
    %v664 = vadd.f32 %v663, %v615
    %v665 = vxor.u32 %v664, 2147483648
    %v666 = vmul.f32 %v665, 1.442695
    %v667 = vpow.pop %v666
    %v668 = vadd.f32 %v667, 1.0
    %v669 = vrcp.pop %v668
    %v670 = vmul.f32 %v668, %v669
    %v671 = vsub.f32 1.0, %v670
    %v672 = vmul.f32 %v669, %v671
    %v673 = vadd.f32 %v669, %v672
    %vm674 = vweird.f32 %v668
    %vm675 = vweird.f32 %v669
    %vm676 = vmor %vm674, %vm675
    %v677 = vsel %vm676, %v669, %v673
    %v678 = vand.u32 2147483647, %v668
    %vm679 = vcmp.eq.f32.partialorder %v678, 8.507059e+37
    %v680 = vand.u32 %v668, 2147483648
    %v681 = vor.u32 1.1754944e-38, %v680
    %v682 = vsel %vm679, %v681, %v677
    %v683 = vmul.f32 1.0, %v682
    %v684 = vtanh.pop %v664
    %v685 = vmul.f32 %v683, %v577
    %687 = vrot.lane.b32.xlu0 %v684, 64
    %v688 = vpop.permute.xlu0 %687
    %v690 = vmul.f32 %v683, %v688
    %692 = vrot.lane.b32.xlu0 %v690, 32
    %v693 = vpop.permute.xlu0 %692
    %v695 = vadd.f32 %v685, %v693
    %v696 = vtanh.pop %v695
    %698 = vrot.lane.b32.xlu0 %v696, 64
    %v699 = vpop.permute.xlu0 %698
    %v701 = vmul.f32 %v683, %v699
    %v702 = vld [vmem:[%s3] sm:$0xff]
    %v703 = vld [vmem:[%s3 + $0x8] sm:$0xff]
    %v704 = vld [vmem:[%s3 + $0x10] sm:$0xff]
    %v705 = vld [vmem:[%s3 + $0x18] sm:$0xff]
    %v706 = vld [vmem:[%s3 + $0x20] sm:$0xff]
    %v707 = vld [vmem:[%s3 + $0x28] sm:$0xff]
    %v708 = vld [vmem:[%s3 + $0x30] sm:$0xff]
    %v709 = vld [vmem:[%s3 + $0x38] sm:$0xff]
    %711 = vrot.lane.b32.xlu0 %v701, 32
    %v712 = vpop.permute.xlu0 %711
    %v713 = vsel %vm83, %v712, 0
    %715 = vmatpush.msra.mxu0 0.0
    %716 = vmatpush.msra.mxu0 0.0
    %717 = vmatpush.msra.mxu0 0.0
    %718 = vmatpush.msra.mxu0 0.0
    %719 = vmatpush.msra.mxu0 0.0
    %720 = vmatpush.msra.mxu0 0.0
    %721 = vmatpush.msra.mxu0 0.0
    %722 = vmatpush.msra.mxu0 0.0
    %723 = vmatpush.msra.mxu0 0.0
    %724 = vmatpush.msra.mxu0 0.0
    %725 = vmatpush.msra.mxu0 0.0
    %726 = vmatpush.msra.mxu0 0.0
    %727 = vmatpush.msra.mxu0 %v708
    %728 = vmatpush.msra.mxu0 %v706
    %729 = vmatpush.msra.mxu0 %v704
    %730 = vmatpush.msra.mxu0 %v702
    %731 = vmatmul.f32.gmra.mxu0 %v713
    %v732 = vpop.f32.mrf.mxu0
    %v733 = vadd.f32 0.0, %v732
    %734 = vdwg.mxu0
    %735 = vmatpush.msra.mxu0 0.0
    %736 = vmatpush.msra.mxu0 0.0
    %737 = vmatpush.msra.mxu0 0.0
    %738 = vmatpush.msra.mxu0 0.0
    %739 = vmatpush.msra.mxu0 0.0
    %740 = vmatpush.msra.mxu0 0.0
    %741 = vmatpush.msra.mxu0 0.0
    %742 = vmatpush.msra.mxu0 0.0
    %743 = vmatpush.msra.mxu0 0.0
    %744 = vmatpush.msra.mxu0 0.0
    %745 = vmatpush.msra.mxu0 0.0
    %746 = vmatpush.msra.mxu0 0.0
    %747 = vmatpush.msra.mxu0 %v709
    %748 = vmatpush.msra.mxu0 %v707
    %749 = vmatpush.msra.mxu0 %v705
    %750 = vmatpush.msra.mxu0 %v703
    %751 = vmatmul.f32.gmra.mxu0 %v713
    %v752 = vpop.f32.mrf.mxu0
    %v753 = vadd.f32 0.0, %v752
    %754 = vdwg.mxu0
    %v755 = vld [vmem:[%s4] sm:$0x1]
    %v756 = vadd.f32 %v753, %v755
    %v757 = vsel %vm402, %v756, -inf
    %758 = vmax.xlane.f32.xlu0 %v757
    %v759 = vpop.xlane.xlu0 %758
    %vm760 = vcmp.ge.f32.partialorder %v756, %v759
    %v761 = vsel %vm760, %v305, 128
    %v762 = vsel %vm402, %v761, 2147483647
    %v763 = vand.u32 %v762, 65535
    %v764 = vshra.s32 %v762, 16
    %v765 = vcvt.s32.f32 %v763
    %v766 = vcvt.s32.f32 %v764
    %767 = vmin.xlane.f32.xlu0 %v766
    %v768 = vpop.xlane.xlu0 %767
    %vm769 = vcmp.eq.f32.partialorder %v766, %v768
    %v770 = vsel %vm769, %v765, inf
    %771 = vmin.xlane.f32.xlu0 %v770
    %v772 = vpop.xlane.xlu0 %771
    %v773 = vcvt.f32.s32 %v772
    %v774 = vcvt.f32.s32 %v768
    %v775 = vshll.u32 %v774, 16
    %v776 = vadd.s32 %v775, %v773
    %s777 = vtos %v776
    %s778 = scalar_lea.smem [#allocation6], 3
    %779 = sst [smem:[%s778]] %s777
    %s780 = scalar_lea.vmem %s2, %s777
    %v781 = vld [vmem:[%s780] sm:$0x1]
    %v782 = vadd.f32 %v781, %v733
    %v783 = vxor.u32 %v782, 2147483648
    %v784 = vmul.f32 %v783, 1.442695
    %v785 = vpow.pop %v784
    %v786 = vadd.f32 %v785, 1.0
    %v787 = vrcp.pop %v786
    %v788 = vmul.f32 %v786, %v787
    %v789 = vsub.f32 1.0, %v788
    %v790 = vmul.f32 %v787, %v789
    %v791 = vadd.f32 %v787, %v790
    %vm792 = vweird.f32 %v786
    %vm793 = vweird.f32 %v787
    %vm794 = vmor %vm792, %vm793
    %v795 = vsel %vm794, %v787, %v791
    %v796 = vand.u32 2147483647, %v786
    %vm797 = vcmp.eq.f32.partialorder %v796, 8.507059e+37
    %v798 = vand.u32 %v786, 2147483648
    %v799 = vor.u32 1.1754944e-38, %v798
    %v800 = vsel %vm797, %v799, %v795
    %v801 = vmul.f32 1.0, %v800
    %v802 = vtanh.pop %v782
    %v803 = vmul.f32 %v801, %v695
    %805 = vrot.lane.b32.xlu0 %v802, 64
    %v806 = vpop.permute.xlu0 %805
    %v808 = vmul.f32 %v801, %v806
    %810 = vrot.lane.b32.xlu0 %v808, 32
    %v811 = vpop.permute.xlu0 %810
    %v813 = vadd.f32 %v803, %v811
    %v814 = vtanh.pop %v813
    %816 = vrot.lane.b32.xlu0 %v814, 64
    %v817 = vpop.permute.xlu0 %816
    %v819 = vmul.f32 %v801, %v817
    %v820 = vld [vmem:[%s3] sm:$0xff]
    %v821 = vld [vmem:[%s3 + $0x8] sm:$0xff]
    %v822 = vld [vmem:[%s3 + $0x10] sm:$0xff]
    %v823 = vld [vmem:[%s3 + $0x18] sm:$0xff]
    %v824 = vld [vmem:[%s3 + $0x20] sm:$0xff]
    %v825 = vld [vmem:[%s3 + $0x28] sm:$0xff]
    %v826 = vld [vmem:[%s3 + $0x30] sm:$0xff]
    %v827 = vld [vmem:[%s3 + $0x38] sm:$0xff]
    %829 = vrot.lane.b32.xlu0 %v819, 32
    %v830 = vpop.permute.xlu0 %829
    %v831 = vsel %vm83, %v830, 0
    %833 = vmatpush.msra.mxu0 0.0
    %834 = vmatpush.msra.mxu0 0.0
    %835 = vmatpush.msra.mxu0 0.0
    %836 = vmatpush.msra.mxu0 0.0
    %837 = vmatpush.msra.mxu0 0.0
    %838 = vmatpush.msra.mxu0 0.0
    %839 = vmatpush.msra.mxu0 0.0
    %840 = vmatpush.msra.mxu0 0.0
    %841 = vmatpush.msra.mxu0 0.0
    %842 = vmatpush.msra.mxu0 0.0
    %843 = vmatpush.msra.mxu0 0.0
    %844 = vmatpush.msra.mxu0 0.0
    %845 = vmatpush.msra.mxu0 %v826
    %846 = vmatpush.msra.mxu0 %v824
    %847 = vmatpush.msra.mxu0 %v822
    %848 = vmatpush.msra.mxu0 %v820
    %849 = vmatmul.f32.gmra.mxu0 %v831
    %v850 = vpop.f32.mrf.mxu0
    %v851 = vadd.f32 0.0, %v850
    %852 = vdwg.mxu0
    %853 = vmatpush.msra.mxu0 0.0
    %854 = vmatpush.msra.mxu0 0.0
    %855 = vmatpush.msra.mxu0 0.0
    %856 = vmatpush.msra.mxu0 0.0
    %857 = vmatpush.msra.mxu0 0.0
    %858 = vmatpush.msra.mxu0 0.0
    %859 = vmatpush.msra.mxu0 0.0
    %860 = vmatpush.msra.mxu0 0.0
    %861 = vmatpush.msra.mxu0 0.0
    %862 = vmatpush.msra.mxu0 0.0
    %863 = vmatpush.msra.mxu0 0.0
    %864 = vmatpush.msra.mxu0 0.0
    %865 = vmatpush.msra.mxu0 %v827
    %866 = vmatpush.msra.mxu0 %v825
    %867 = vmatpush.msra.mxu0 %v823
    %868 = vmatpush.msra.mxu0 %v821
    %869 = vmatmul.f32.gmra.mxu0 %v831
    %v870 = vpop.f32.mrf.mxu0
    %v871 = vadd.f32 0.0, %v870
    %872 = vdwg.mxu0
    %v873 = vld [vmem:[%s4] sm:$0x1]
    %v874 = vadd.f32 %v871, %v873
    %v875 = vsel %vm402, %v874, -inf
    %876 = vmax.xlane.f32.xlu0 %v875
    %v877 = vpop.xlane.xlu0 %876
    %vm878 = vcmp.ge.f32.partialorder %v874, %v877
    %v879 = vsel %vm878, %v305, 128
    %v880 = vsel %vm402, %v879, 2147483647
    %v881 = vand.u32 %v880, 65535
    %v882 = vshra.s32 %v880, 16
    %v883 = vcvt.s32.f32 %v881
    %v884 = vcvt.s32.f32 %v882
    %885 = vmin.xlane.f32.xlu0 %v884
    %v886 = vpop.xlane.xlu0 %885
    %vm887 = vcmp.eq.f32.partialorder %v884, %v886
    %v888 = vsel %vm887, %v883, inf
    %889 = vmin.xlane.f32.xlu0 %v888
    %v890 = vpop.xlane.xlu0 %889
    %v891 = vcvt.f32.s32 %v890
    %v892 = vcvt.f32.s32 %v886
    %v893 = vshll.u32 %v892, 16
    %v894 = vadd.s32 %v893, %v891
    %s895 = vtos %v894
    %s896 = scalar_lea.smem [#allocation6], 4
    %897 = sst [smem:[%s896]] %s895
    %s898 = scalar_lea.vmem %s2, %s895
    %v899 = vld [vmem:[%s898] sm:$0x1]
    %v900 = vadd.f32 %v899, %v851
    %v901 = vxor.u32 %v900, 2147483648
    %v902 = vmul.f32 %v901, 1.442695
    %v903 = vpow.pop %v902
    %v904 = vadd.f32 %v903, 1.0
    %v905 = vrcp.pop %v904
    %v906 = vmul.f32 %v904, %v905
    %v907 = vsub.f32 1.0, %v906
    %v908 = vmul.f32 %v905, %v907
    %v909 = vadd.f32 %v905, %v908
    %vm910 = vweird.f32 %v904
    %vm911 = vweird.f32 %v905
    %vm912 = vmor %vm910, %vm911
    %v913 = vsel %vm912, %v905, %v909
    %v914 = vand.u32 2147483647, %v904
    %vm915 = vcmp.eq.f32.partialorder %v914, 8.507059e+37
    %v916 = vand.u32 %v904, 2147483648
    %v917 = vor.u32 1.1754944e-38, %v916
    %v918 = vsel %vm915, %v917, %v913
    %v919 = vmul.f32 1.0, %v918
    %v920 = vtanh.pop %v900
    %v921 = vmul.f32 %v919, %v813
    %923 = vrot.lane.b32.xlu0 %v920, 64
    %v924 = vpop.permute.xlu0 %923
    %v926 = vmul.f32 %v919, %v924
    %928 = vrot.lane.b32.xlu0 %v926, 32
    %v929 = vpop.permute.xlu0 %928
    %v931 = vadd.f32 %v921, %v929
    %v932 = vtanh.pop %v931
    %934 = vrot.lane.b32.xlu0 %v932, 64
    %v935 = vpop.permute.xlu0 %934
    %v937 = vmul.f32 %v919, %v935
    %v938 = vld [vmem:[%s3] sm:$0xff]
    %v939 = vld [vmem:[%s3 + $0x8] sm:$0xff]
    %v940 = vld [vmem:[%s3 + $0x10] sm:$0xff]
    %v941 = vld [vmem:[%s3 + $0x18] sm:$0xff]
    %v942 = vld [vmem:[%s3 + $0x20] sm:$0xff]
    %v943 = vld [vmem:[%s3 + $0x28] sm:$0xff]
    %v944 = vld [vmem:[%s3 + $0x30] sm:$0xff]
    %v945 = vld [vmem:[%s3 + $0x38] sm:$0xff]
    %947 = vrot.lane.b32.xlu0 %v937, 32
    %v948 = vpop.permute.xlu0 %947
    %v949 = vsel %vm83, %v948, 0
    %951 = vmatpush.msra.mxu0 0.0
    %952 = vmatpush.msra.mxu0 0.0
    %953 = vmatpush.msra.mxu0 0.0
    %954 = vmatpush.msra.mxu0 0.0
    %955 = vmatpush.msra.mxu0 0.0
    %956 = vmatpush.msra.mxu0 0.0
    %957 = vmatpush.msra.mxu0 0.0
    %958 = vmatpush.msra.mxu0 0.0
    %959 = vmatpush.msra.mxu0 0.0
    %960 = vmatpush.msra.mxu0 0.0
    %961 = vmatpush.msra.mxu0 0.0
    %962 = vmatpush.msra.mxu0 0.0
    %963 = vmatpush.msra.mxu0 %v944
    %964 = vmatpush.msra.mxu0 %v942
    %965 = vmatpush.msra.mxu0 %v940
    %966 = vmatpush.msra.mxu0 %v938
    %967 = vmatmul.f32.gmra.mxu0 %v949
    %v968 = vpop.f32.mrf.mxu0
    %v969 = vadd.f32 0.0, %v968
    %970 = vdwg.mxu0
    %971 = vmatpush.msra.mxu0 0.0
    %972 = vmatpush.msra.mxu0 0.0
    %973 = vmatpush.msra.mxu0 0.0
    %974 = vmatpush.msra.mxu0 0.0
    %975 = vmatpush.msra.mxu0 0.0
    %976 = vmatpush.msra.mxu0 0.0
    %977 = vmatpush.msra.mxu0 0.0
    %978 = vmatpush.msra.mxu0 0.0
    %979 = vmatpush.msra.mxu0 0.0
    %980 = vmatpush.msra.mxu0 0.0
    %981 = vmatpush.msra.mxu0 0.0
    %982 = vmatpush.msra.mxu0 0.0
    %983 = vmatpush.msra.mxu0 %v945
    %984 = vmatpush.msra.mxu0 %v943
    %985 = vmatpush.msra.mxu0 %v941
    %986 = vmatpush.msra.mxu0 %v939
    %987 = vmatmul.f32.gmra.mxu0 %v949
    %v988 = vpop.f32.mrf.mxu0
    %v989 = vadd.f32 0.0, %v988
    %990 = vdwg.mxu0
    %v991 = vld [vmem:[%s4] sm:$0x1]
    %v992 = vadd.f32 %v989, %v991
    %v993 = vsel %vm402, %v992, -inf
    %994 = vmax.xlane.f32.xlu0 %v993
    %v995 = vpop.xlane.xlu0 %994
    %vm996 = vcmp.ge.f32.partialorder %v992, %v995
    %v997 = vsel %vm996, %v305, 128
    %v998 = vsel %vm402, %v997, 2147483647
    %v999 = vand.u32 %v998, 65535
    %v1000 = vshra.s32 %v998, 16
    %v1001 = vcvt.s32.f32 %v999
    %v1002 = vcvt.s32.f32 %v1000
    %1003 = vmin.xlane.f32.xlu0 %v1002
    %v1004 = vpop.xlane.xlu0 %1003
    %vm1005 = vcmp.eq.f32.partialorder %v1002, %v1004
    %v1006 = vsel %vm1005, %v1001, inf
    %1007 = vmin.xlane.f32.xlu0 %v1006
    %v1008 = vpop.xlane.xlu0 %1007
    %v1009 = vcvt.f32.s32 %v1008
    %v1010 = vcvt.f32.s32 %v1004
    %v1011 = vshll.u32 %v1010, 16
    %v1012 = vadd.s32 %v1011, %v1009
    %s1013 = vtos %v1012
    %s1014 = scalar_lea.smem [#allocation6], 5
    %1015 = sst [smem:[%s1014]] %s1013
    %s1016 = scalar_lea.vmem %s2, %s1013
    %v1017 = vld [vmem:[%s1016] sm:$0x1]
    %v1018 = vadd.f32 %v1017, %v969
    %v1019 = vxor.u32 %v1018, 2147483648
    %v1020 = vmul.f32 %v1019, 1.442695
    %v1021 = vpow.pop %v1020
    %v1022 = vadd.f32 %v1021, 1.0
    %v1023 = vrcp.pop %v1022
    %v1024 = vmul.f32 %v1022, %v1023
    %v1025 = vsub.f32 1.0, %v1024
    %v1026 = vmul.f32 %v1023, %v1025
    %v1027 = vadd.f32 %v1023, %v1026
    %vm1028 = vweird.f32 %v1022
    %vm1029 = vweird.f32 %v1023
    %vm1030 = vmor %vm1028, %vm1029
    %v1031 = vsel %vm1030, %v1023, %v1027
    %v1032 = vand.u32 2147483647, %v1022
    %vm1033 = vcmp.eq.f32.partialorder %v1032, 8.507059e+37
    %v1034 = vand.u32 %v1022, 2147483648
    %v1035 = vor.u32 1.1754944e-38, %v1034
    %v1036 = vsel %vm1033, %v1035, %v1031
    %v1037 = vmul.f32 1.0, %v1036
    %v1038 = vtanh.pop %v1018
    %v1039 = vmul.f32 %v1037, %v931
    %1041 = vrot.lane.b32.xlu0 %v1038, 64
    %v1042 = vpop.permute.xlu0 %1041
    %v1044 = vmul.f32 %v1037, %v1042
    %1046 = vrot.lane.b32.xlu0 %v1044, 32
    %v1047 = vpop.permute.xlu0 %1046
    %v1049 = vadd.f32 %v1039, %v1047
    %v1050 = vtanh.pop %v1049
    %1052 = vrot.lane.b32.xlu0 %v1050, 64
    %v1053 = vpop.permute.xlu0 %1052
    %v1055 = vmul.f32 %v1037, %v1053
    %v1056 = vld [vmem:[%s3] sm:$0xff]
    %v1057 = vld [vmem:[%s3 + $0x8] sm:$0xff]
    %v1058 = vld [vmem:[%s3 + $0x10] sm:$0xff]
    %v1059 = vld [vmem:[%s3 + $0x18] sm:$0xff]
    %v1060 = vld [vmem:[%s3 + $0x20] sm:$0xff]
    %v1061 = vld [vmem:[%s3 + $0x28] sm:$0xff]
    %v1062 = vld [vmem:[%s3 + $0x30] sm:$0xff]
    %v1063 = vld [vmem:[%s3 + $0x38] sm:$0xff]
    %1065 = vrot.lane.b32.xlu0 %v1055, 32
    %v1066 = vpop.permute.xlu0 %1065
    %v1067 = vsel %vm83, %v1066, 0
    %1069 = vmatpush.msra.mxu0 0.0
    %1070 = vmatpush.msra.mxu0 0.0
    %1071 = vmatpush.msra.mxu0 0.0
    %1072 = vmatpush.msra.mxu0 0.0
    %1073 = vmatpush.msra.mxu0 0.0
    %1074 = vmatpush.msra.mxu0 0.0
    %1075 = vmatpush.msra.mxu0 0.0
    %1076 = vmatpush.msra.mxu0 0.0
    %1077 = vmatpush.msra.mxu0 0.0
    %1078 = vmatpush.msra.mxu0 0.0
    %1079 = vmatpush.msra.mxu0 0.0
    %1080 = vmatpush.msra.mxu0 0.0
    %1081 = vmatpush.msra.mxu0 %v1062
    %1082 = vmatpush.msra.mxu0 %v1060
    %1083 = vmatpush.msra.mxu0 %v1058
    %1084 = vmatpush.msra.mxu0 %v1056
    %1085 = vmatmul.f32.gmra.mxu0 %v1067
    %v1086 = vpop.f32.mrf.mxu0
    %v1087 = vadd.f32 0.0, %v1086
    %1088 = vdwg.mxu0
    %1089 = vmatpush.msra.mxu0 0.0
    %1090 = vmatpush.msra.mxu0 0.0
    %1091 = vmatpush.msra.mxu0 0.0
    %1092 = vmatpush.msra.mxu0 0.0
    %1093 = vmatpush.msra.mxu0 0.0
    %1094 = vmatpush.msra.mxu0 0.0
    %1095 = vmatpush.msra.mxu0 0.0
    %1096 = vmatpush.msra.mxu0 0.0
    %1097 = vmatpush.msra.mxu0 0.0
    %1098 = vmatpush.msra.mxu0 0.0
    %1099 = vmatpush.msra.mxu0 0.0
    %1100 = vmatpush.msra.mxu0 0.0
    %1101 = vmatpush.msra.mxu0 %v1063
    %1102 = vmatpush.msra.mxu0 %v1061
    %1103 = vmatpush.msra.mxu0 %v1059
    %1104 = vmatpush.msra.mxu0 %v1057
    %1105 = vmatmul.f32.gmra.mxu0 %v1067
    %v1106 = vpop.f32.mrf.mxu0
    %v1107 = vadd.f32 0.0, %v1106
    %1108 = vdwg.mxu0
    %v1109 = vld [vmem:[%s4] sm:$0x1]
    %v1110 = vadd.f32 %v1107, %v1109
    %v1111 = vsel %vm402, %v1110, -inf
    %1112 = vmax.xlane.f32.xlu0 %v1111
    %v1113 = vpop.xlane.xlu0 %1112
    %vm1114 = vcmp.ge.f32.partialorder %v1110, %v1113
    %v1115 = vsel %vm1114, %v305, 128
    %v1116 = vsel %vm402, %v1115, 2147483647
    %v1117 = vand.u32 %v1116, 65535
    %v1118 = vshra.s32 %v1116, 16
    %v1119 = vcvt.s32.f32 %v1117
    %v1120 = vcvt.s32.f32 %v1118
    %1121 = vmin.xlane.f32.xlu0 %v1120
    %v1122 = vpop.xlane.xlu0 %1121
    %vm1123 = vcmp.eq.f32.partialorder %v1120, %v1122
    %v1124 = vsel %vm1123, %v1119, inf
    %1125 = vmin.xlane.f32.xlu0 %v1124
    %v1126 = vpop.xlane.xlu0 %1125
    %v1127 = vcvt.f32.s32 %v1126
    %v1128 = vcvt.f32.s32 %v1122
    %v1129 = vshll.u32 %v1128, 16
    %v1130 = vadd.s32 %v1129, %v1127
    %s1131 = vtos %v1130
    %s1132 = scalar_lea.smem [#allocation6], 6
    %1133 = sst [smem:[%s1132]] %s1131
    %s1134 = scalar_lea.vmem %s2, %s1131
    %v1135 = vld [vmem:[%s1134] sm:$0x1]
    %v1136 = vadd.f32 %v1135, %v1087
    %v1137 = vxor.u32 %v1136, 2147483648
    %v1138 = vmul.f32 %v1137, 1.442695
    %v1139 = vpow.pop %v1138
    %v1140 = vadd.f32 %v1139, 1.0
    %v1141 = vrcp.pop %v1140
    %v1142 = vmul.f32 %v1140, %v1141
    %v1143 = vsub.f32 1.0, %v1142
    %v1144 = vmul.f32 %v1141, %v1143
    %v1145 = vadd.f32 %v1141, %v1144
    %vm1146 = vweird.f32 %v1140
    %vm1147 = vweird.f32 %v1141
    %vm1148 = vmor %vm1146, %vm1147
    %v1149 = vsel %vm1148, %v1141, %v1145
    %v1150 = vand.u32 2147483647, %v1140
    %vm1151 = vcmp.eq.f32.partialorder %v1150, 8.507059e+37
    %v1152 = vand.u32 %v1140, 2147483648
    %v1153 = vor.u32 1.1754944e-38, %v1152
    %v1154 = vsel %vm1151, %v1153, %v1149
    %v1155 = vmul.f32 1.0, %v1154
    %v1156 = vtanh.pop %v1136
    %v1157 = vmul.f32 %v1155, %v1049
    %1159 = vrot.lane.b32.xlu0 %v1156, 64
    %v1160 = vpop.permute.xlu0 %1159
    %v1162 = vmul.f32 %v1155, %v1160
    %1164 = vrot.lane.b32.xlu0 %v1162, 32
    %v1165 = vpop.permute.xlu0 %1164
    %v1167 = vadd.f32 %v1157, %v1165
    %v1168 = vtanh.pop %v1167
    %1170 = vrot.lane.b32.xlu0 %v1168, 64
    %v1171 = vpop.permute.xlu0 %1170
    %v1173 = vmul.f32 %v1155, %v1171
    %v1174 = vld [vmem:[%s3 + $0x8] sm:$0xff]
    %v1175 = vld [vmem:[%s3 + $0x18] sm:$0xff]
    %v1176 = vld [vmem:[%s3 + $0x28] sm:$0xff]
    %v1177 = vld [vmem:[%s3 + $0x38] sm:$0xff]
    %1179 = vrot.lane.b32.xlu0 %v1173, 32
    %v1180 = vpop.permute.xlu0 %1179
    %v1181 = vsel %vm83, %v1180, 0
    %1183 = vmatpush.msra.mxu0 0.0
    %1184 = vmatpush.msra.mxu0 0.0
    %1185 = vmatpush.msra.mxu0 0.0
    %1186 = vmatpush.msra.mxu0 0.0
    %1187 = vmatpush.msra.mxu0 0.0
    %1188 = vmatpush.msra.mxu0 0.0
    %1189 = vmatpush.msra.mxu0 0.0
    %1190 = vmatpush.msra.mxu0 0.0
    %1191 = vmatpush.msra.mxu0 0.0
    %1192 = vmatpush.msra.mxu0 0.0
    %1193 = vmatpush.msra.mxu0 0.0
    %1194 = vmatpush.msra.mxu0 0.0
    %1195 = vmatpush.msra.mxu0 %v1177
    %1196 = vmatpush.msra.mxu0 %v1176
    %1197 = vmatpush.msra.mxu0 %v1175
    %1198 = vmatpush.msra.mxu0 %v1174
    %1199 = vmatmul.f32.gmra.mxu0 %v1181
    %v1200 = vpop.f32.mrf.mxu0
    %v1201 = vadd.f32 0.0, %v1200
    %1202 = vdwg.mxu0
    %v1203 = vld [vmem:[%s4] sm:$0x1]
    %v1204 = vadd.f32 %v1201, %v1203
    %v1205 = vsel %vm402, %v1204, -inf
    %1206 = vmax.xlane.f32.xlu0 %v1205
    %v1207 = vpop.xlane.xlu0 %1206
    %vm1208 = vcmp.ge.f32.partialorder %v1204, %v1207
    %v1209 = vsel %vm1208, %v305, 128
    %v1210 = vsel %vm402, %v1209, 2147483647
    %v1211 = vand.u32 %v1210, 65535
    %v1212 = vshra.s32 %v1210, 16
    %v1213 = vcvt.s32.f32 %v1211
    %v1214 = vcvt.s32.f32 %v1212
    %1215 = vmin.xlane.f32.xlu0 %v1214
    %v1216 = vpop.xlane.xlu0 %1215
    %vm1217 = vcmp.eq.f32.partialorder %v1214, %v1216
    %v1218 = vsel %vm1217, %v1213, inf
    %1219 = vmin.xlane.f32.xlu0 %v1218
    %v1220 = vpop.xlane.xlu0 %1219
    %v1221 = vcvt.f32.s32 %v1220
    %v1222 = vcvt.f32.s32 %v1216
    %v1223 = vshll.u32 %v1222, 16
    %v1224 = vadd.s32 %v1223, %v1221
    %s1225 = vtos %v1224
    %s1226 = scalar_lea.smem [#allocation6], 7
    %1227 = sst [smem:[%s1226]] %s1225
    // Predicated region
    $region26: #{inference_wrapper_forward.1} parent=1 // pred_check
      _
    $region27: #{inference_wrapper_forward.1} parent=1 // pred_check_branch
      %1229 = sbr.rel (0) target = $region29
    $region28: #{inference_wrapper_forward.1} parent=1 // pred_region
      %1231 = vsyncadd [#allocation4], 0
      %s1233 = sshll.u32 %s5, 4
      %s1234 = int_to_ptr.hbm [resolvable:$true] %s1233
      %1236 = dma.smem_to_hbm [#allocation6], 16, %s1234, [#allocation4]
    $region29: #{inference_wrapper_forward.1} parent=1 // pred_fallthru
      _
    // Predicated region
    $region30: #{inference_wrapper_forward.1} parent=1 // pred_check
      _
    $region31: #{inference_wrapper_forward.1} parent=1 // pred_check_branch
      %1238 = sbr.rel (0) target = $region33
    $region32: #{inference_wrapper_forward.1} parent=1 // pred_region
      %1240 = dma.done [#allocation4], 16
    $region33: #{inference_wrapper_forward.1} parent=1 // pred_fallthru
      _
    %1241 = sfence
    %1242 = vsyncpa [#allocation4], 1
    %1243 = vsyncpa [#allocation5], 1

</llo_original>
